<compile_context>
chip_gen: v7x
topology: tpu7x:2x2x1
jax: 0.10.0
libtpu: 0.0.40
codegen_flags: <defaults>
</compile_context>

<pallas_src>
import jax
import jax.numpy as jnp
from jax.experimental import pallas as pl
from jax.experimental.pallas import tpu as pltpu

LEAK = 0.01  # nn.LeakyReLU default negative_slope
# cpx[:, j] = -x[:, PERM[j]]
PERM = (3, 4, 5, 0, 1, 2, 9, 10, 11, 6, 7, 8, 12, 13)
LAYER_DIMS = [(14, 80), (80, 80), (80, 40), (40, 20), (20, 1)]


def _leaky(h):
    return jnp.where(h > 0, h, LEAK * h)


def mlp_cp_kernel(x_ref, w1, w1cp, b1, w2, b2, w3, b3, w4, b4, w5, o_ref):
    """One batch tile, batch on lanes: x_ref (14, tb) -> o_ref (1, tb)."""
    tb = o_ref.shape[-1]
    x = x_ref[...]                                                    # (14, tb)

    # Layer 1 for both branches; the cpx branch uses the folded weights.
    h1x = _leaky(jnp.dot(w1[...], x, preferred_element_type=jnp.float32) + b1[...])
    h1c = _leaky(jnp.dot(w1cp[...], x, preferred_element_type=jnp.float32) + b1[...])
    h = jnp.concatenate([h1x, h1c], axis=1)                           # (80, 2*tb)

    # Layers 2-4 run once on both branches (batch stacked along lanes).
    h = _leaky(jnp.dot(w2[...], h, preferred_element_type=jnp.float32) + b2[...])
    h = _leaky(jnp.dot(w3[...], h, preferred_element_type=jnp.float32) + b3[...])
    h = _leaky(jnp.dot(w4[...], h, preferred_element_type=jnp.float32) + b4[...])
    # h: (20, 2*tb)

    # Final layer: b5 cancels in f(x) - f(cpx), so project the difference only.
    diff = h[:, :tb] - h[:, tb:]                                      # (20, tb)
    o_ref[...] = jnp.dot(w5[...], diff, preferred_element_type=jnp.float32)


def perm_matrix():
    """(P @ v)[j] = v[PERM[j]] for a column vector v of 14 features."""
    p = jnp.zeros((14, 14), jnp.float32)
    for j, src in enumerate(PERM):
        p = p.at[j, src].set(1.0)
    return p


def _round_up(a, m):
    return ((a + m - 1) // m) * m


def init_params(key):
    """Deterministic init matching nn.Linear (PyTorch layout: W (out,in), b (out,))."""
    params = []
    for (fan_in, fan_out) in LAYER_DIMS:
        key, kw, kb = jax.random.split(key, 3)
        bound = 1.0 / jnp.sqrt(fan_in)
        w = jax.random.uniform(kw, (fan_out, fan_in), jnp.float32, -bound, bound)
        b = jax.random.uniform(kb, (fan_out,), jnp.float32, -bound, bound)
        params.append((w, b))
    return params


def network_forward(x, params, *, tb=1024):
    """x: (B, 14) float32; params: list of (W, b) in PyTorch layout. Returns (B, 1)."""
    B, F = x.shape
    assert F == 14

    # Lane-dense batch tile (multiple of 128); keep >=2 grid steps when possible
    # so both v7x TensorCores get work on the parallel axis.
    tb = min(tb, _round_up(pl.cdiv(B, 2), 128))
    tb = max(tb, 128)
    B_pad = _round_up(B, tb)

    # Wrapper-side layout plumbing: batch-on-lanes slab, zero-padded to B_pad.
    x_t = jnp.zeros((14, B_pad), jnp.float32).at[:, :B].set(x.T)

    (w1, b1), (w2, b2), (w3, b3), (w4, b4), (w5, _b5) = params
    # Fold the CP conjugation (feature permutation + global sign flip) into W1.
    w1cp = -(w1 @ perm_matrix())                                      # exact in f32
    col = lambda b: b.reshape(-1, 1)

    kernel_args = [x_t, w1, w1cp, col(b1), w2, col(b2), w3, col(b3),
                   w4, col(b4), w5]                                   # b5 cancels

    def full_spec(a):
        shape = a.shape
        return pl.BlockSpec(shape, lambda i: tuple(0 for _ in shape))

    in_specs = ([pl.BlockSpec((14, tb), lambda i: (0, i))]            # x batch tile
                + [full_spec(a) for a in kernel_args[1:]])            # weights/biases

    out = pl.pallas_call(
        mlp_cp_kernel,
        out_shape=jax.ShapeDtypeStruct((1, B_pad), jnp.float32),
        grid_spec=pltpu.PrefetchScalarGridSpec(
            num_scalar_prefetch=0,
            grid=(B_pad // tb,),
            in_specs=in_specs,
            out_specs=pl.BlockSpec((1, tb), lambda i: (0, i)),        # lane-dense store
        ),
        compiler_params=pltpu.CompilerParams(
            dimension_semantics=("parallel",)),
    )(*kernel_args)

    return out[0, :B].reshape(B, 1)


def network_reference(x, params):
    """Pure-JAX reference reproducing the PyTorch forward exactly."""
    def mlp(h):
        for i, (w, b) in enumerate(params):
            h = h @ w.T + b
            if i < 4:
                h = _leaky(h)
        return h
    cpx = -x[:, jnp.array(PERM)]
    return mlp(x) - mlp(cpx)


if __name__ == "__main__":
    key = jax.random.PRNGKey(0)
    kx, kp = jax.random.split(key)
    B = 300  # not a tile multiple: exercises padding; grid has 2 steps
    x = jax.random.normal(kx, (B, 14), jnp.float32)
    params = init_params(kp)

    out = network_forward(x, params)
    out = jax.block_until_ready(out)

    ref = network_reference(x, params)
    assert out.shape == (B, 1)
    assert jnp.allclose(out, ref, atol=1e-4, rtol=1e-4), float(
        jnp.max(jnp.abs(out - ref)))
    print("KERNEL_OK")
</pallas_src>

<mosaic_0001>
module attributes {stable_mosaic.version = 11 : i64} {
  func.func @mlp_cp_kernel(%arg0: i32, %arg1: memref<14x256xf32, #tpu.memory_space<vmem>>, %arg2: memref<80x14xf32, #tpu.memory_space<vmem>>, %arg3: memref<80x14xf32, #tpu.memory_space<vmem>>, %arg4: memref<80x1xf32, #tpu.memory_space<vmem>>, %arg5: memref<80x80xf32, #tpu.memory_space<vmem>>, %arg6: memref<80x1xf32, #tpu.memory_space<vmem>>, %arg7: memref<40x80xf32, #tpu.memory_space<vmem>>, %arg8: memref<40x1xf32, #tpu.memory_space<vmem>>, %arg9: memref<20x40xf32, #tpu.memory_space<vmem>>, %arg10: memref<20x1xf32, #tpu.memory_space<vmem>>, %arg11: memref<1x20xf32, #tpu.memory_space<vmem>>, %arg12: memref<1x256xf32, #tpu.memory_space<vmem>>) attributes {dimension_semantics = [#tpu.dimension_semantics<parallel>], iteration_bounds = array<i64: 2>, scalar_prefetch = 0 : i64, scratch_operands = 0 : i64, tpu.core_type = #tpu.core_type<tc>, window_params = [{transform_indices = @transform_0, window_bounds = array<i64: 14, 256>}, {pipeline_mode = #tpu.pipeline_mode<synchronous>, transform_indices = @transform_1, window_bounds = array<i64: 80, 14>}, {pipeline_mode = #tpu.pipeline_mode<synchronous>, transform_indices = @transform_2, window_bounds = array<i64: 80, 14>}, {pipeline_mode = #tpu.pipeline_mode<synchronous>, transform_indices = @transform_3, window_bounds = array<i64: 80, 1>}, {pipeline_mode = #tpu.pipeline_mode<synchronous>, transform_indices = @transform_4, window_bounds = array<i64: 80, 80>}, {pipeline_mode = #tpu.pipeline_mode<synchronous>, transform_indices = @transform_5, window_bounds = array<i64: 80, 1>}, {pipeline_mode = #tpu.pipeline_mode<synchronous>, transform_indices = @transform_6, window_bounds = array<i64: 40, 80>}, {pipeline_mode = #tpu.pipeline_mode<synchronous>, transform_indices = @transform_7, window_bounds = array<i64: 40, 1>}, {pipeline_mode = #tpu.pipeline_mode<synchronous>, transform_indices = @transform_8, window_bounds = array<i64: 20, 40>}, {pipeline_mode = #tpu.pipeline_mode<synchronous>, transform_indices = @transform_9, window_bounds = array<i64: 20, 1>}, {pipeline_mode = #tpu.pipeline_mode<synchronous>, transform_indices = @transform_10, window_bounds = array<i64: 1, 20>}, {transform_indices = @transform_11, window_bounds = array<i64: 1, 256>}]} {
    %c0 = arith.constant 0 : index
    %c0_0 = arith.constant 0 : index
    %0 = vector.load %arg1[%c0, %c0_0] : memref<14x256xf32, #tpu.memory_space<vmem>>, vector<14x256xf32>
    %c0_1 = arith.constant 0 : index
    %c0_2 = arith.constant 0 : index
    %1 = vector.load %arg2[%c0_1, %c0_2] : memref<80x14xf32, #tpu.memory_space<vmem>>, vector<80x14xf32>
    %cst = arith.constant dense<0.000000e+00> : vector<80x256xf32>
    %2 = tpu.matmul %1, %0, %cst {dimension_numbers = #tpu.dot_dimension_numbers<[1], [0], [0], [1], [0, 0, 1, 1], [], []>} : vector<80x14xf32>, vector<14x256xf32>, vector<80x256xf32> -> vector<80x256xf32>
    %c0_3 = arith.constant 0 : index
    %c0_4 = arith.constant 0 : index
    %3 = vector.load %arg4[%c0_3, %c0_4] : memref<80x1xf32, #tpu.memory_space<vmem>>, vector<80x1xf32>
    %4 = vector.broadcast %3 : vector<80x1xf32> to vector<80x256xf32>
    %5 = arith.addf %2, %4 : vector<80x256xf32>
    %cst_5 = arith.constant 0.000000e+00 : f32
    %6 = vector.broadcast %cst_5 : f32 to vector<80x256xf32>
    %7 = arith.cmpf ogt, %5, %6 : vector<80x256xf32>
    %cst_6 = arith.constant 0.00999999977 : f32
    %8 = vector.broadcast %cst_6 : f32 to vector<80x256xf32>
    %9 = arith.mulf %8, %5 : vector<80x256xf32>
    %10 = arith.select %7, %5, %9 : vector<80x256xi1>, vector<80x256xf32>
    %c0_7 = arith.constant 0 : index
    %c0_8 = arith.constant 0 : index
    %11 = vector.load %arg3[%c0_7, %c0_8] : memref<80x14xf32, #tpu.memory_space<vmem>>, vector<80x14xf32>
    %cst_9 = arith.constant dense<0.000000e+00> : vector<80x256xf32>
    %12 = tpu.matmul %11, %0, %cst_9 {dimension_numbers = #tpu.dot_dimension_numbers<[1], [0], [0], [1], [0, 0, 1, 1], [], []>} : vector<80x14xf32>, vector<14x256xf32>, vector<80x256xf32> -> vector<80x256xf32>
    %c0_10 = arith.constant 0 : index
    %c0_11 = arith.constant 0 : index
    %13 = vector.load %arg4[%c0_10, %c0_11] : memref<80x1xf32, #tpu.memory_space<vmem>>, vector<80x1xf32>
    %14 = vector.broadcast %13 : vector<80x1xf32> to vector<80x256xf32>
    %15 = arith.addf %12, %14 : vector<80x256xf32>
    %cst_12 = arith.constant 0.000000e+00 : f32
    %16 = vector.broadcast %cst_12 : f32 to vector<80x256xf32>
    %17 = arith.cmpf ogt, %15, %16 : vector<80x256xf32>
    %cst_13 = arith.constant 0.00999999977 : f32
    %18 = vector.broadcast %cst_13 : f32 to vector<80x256xf32>
    %19 = arith.mulf %18, %15 : vector<80x256xf32>
    %20 = arith.select %17, %15, %19 : vector<80x256xi1>, vector<80x256xf32>
    %21 = tpu.concatenate %10, %20 in 1 : vector<80x256xf32>, vector<80x256xf32> -> vector<80x512xf32>
    %c0_14 = arith.constant 0 : index
    %c0_15 = arith.constant 0 : index
    %22 = vector.load %arg5[%c0_14, %c0_15] : memref<80x80xf32, #tpu.memory_space<vmem>>, vector<80x80xf32>
    %cst_16 = arith.constant dense<0.000000e+00> : vector<80x512xf32>
    %23 = tpu.matmul %22, %21, %cst_16 {dimension_numbers = #tpu.dot_dimension_numbers<[1], [0], [0], [1], [0, 0, 1, 1], [], []>} : vector<80x80xf32>, vector<80x512xf32>, vector<80x512xf32> -> vector<80x512xf32>
    %c0_17 = arith.constant 0 : index
    %c0_18 = arith.constant 0 : index
    %24 = vector.load %arg6[%c0_17, %c0_18] : memref<80x1xf32, #tpu.memory_space<vmem>>, vector<80x1xf32>
    %25 = vector.broadcast %24 : vector<80x1xf32> to vector<80x512xf32>
    %26 = arith.addf %23, %25 : vector<80x512xf32>
    %cst_19 = arith.constant 0.000000e+00 : f32
    %27 = vector.broadcast %cst_19 : f32 to vector<80x512xf32>
    %28 = arith.cmpf ogt, %26, %27 : vector<80x512xf32>
    %cst_20 = arith.constant 0.00999999977 : f32
    %29 = vector.broadcast %cst_20 : f32 to vector<80x512xf32>
    %30 = arith.mulf %29, %26 : vector<80x512xf32>
    %31 = arith.select %28, %26, %30 : vector<80x512xi1>, vector<80x512xf32>
    %c0_21 = arith.constant 0 : index
    %c0_22 = arith.constant 0 : index
    %32 = vector.load %arg7[%c0_21, %c0_22] : memref<40x80xf32, #tpu.memory_space<vmem>>, vector<40x80xf32>
    %cst_23 = arith.constant dense<0.000000e+00> : vector<40x512xf32>
    %33 = tpu.matmul %32, %31, %cst_23 {dimension_numbers = #tpu.dot_dimension_numbers<[1], [0], [0], [1], [0, 0, 1, 1], [], []>} : vector<40x80xf32>, vector<80x512xf32>, vector<40x512xf32> -> vector<40x512xf32>
    %c0_24 = arith.constant 0 : index
    %c0_25 = arith.constant 0 : index
    %34 = vector.load %arg8[%c0_24, %c0_25] : memref<40x1xf32, #tpu.memory_space<vmem>>, vector<40x1xf32>
    %35 = vector.broadcast %34 : vector<40x1xf32> to vector<40x512xf32>
    %36 = arith.addf %33, %35 : vector<40x512xf32>
    %cst_26 = arith.constant 0.000000e+00 : f32
    %37 = vector.broadcast %cst_26 : f32 to vector<40x512xf32>
    %38 = arith.cmpf ogt, %36, %37 : vector<40x512xf32>
    %cst_27 = arith.constant 0.00999999977 : f32
    %39 = vector.broadcast %cst_27 : f32 to vector<40x512xf32>
    %40 = arith.mulf %39, %36 : vector<40x512xf32>
    %41 = arith.select %38, %36, %40 : vector<40x512xi1>, vector<40x512xf32>
    %c0_28 = arith.constant 0 : index
    %c0_29 = arith.constant 0 : index
    %42 = vector.load %arg9[%c0_28, %c0_29] : memref<20x40xf32, #tpu.memory_space<vmem>>, vector<20x40xf32>
    %cst_30 = arith.constant dense<0.000000e+00> : vector<20x512xf32>
    %43 = tpu.matmul %42, %41, %cst_30 {dimension_numbers = #tpu.dot_dimension_numbers<[1], [0], [0], [1], [0, 0, 1, 1], [], []>} : vector<20x40xf32>, vector<40x512xf32>, vector<20x512xf32> -> vector<20x512xf32>
    %c0_31 = arith.constant 0 : index
    %c0_32 = arith.constant 0 : index
    %44 = vector.load %arg10[%c0_31, %c0_32] : memref<20x1xf32, #tpu.memory_space<vmem>>, vector<20x1xf32>
    %45 = vector.broadcast %44 : vector<20x1xf32> to vector<20x512xf32>
    %46 = arith.addf %43, %45 : vector<20x512xf32>
    %cst_33 = arith.constant 0.000000e+00 : f32
    %47 = vector.broadcast %cst_33 : f32 to vector<20x512xf32>
    %48 = arith.cmpf ogt, %46, %47 : vector<20x512xf32>
    %cst_34 = arith.constant 0.00999999977 : f32
    %49 = vector.broadcast %cst_34 : f32 to vector<20x512xf32>
    %50 = arith.mulf %49, %46 : vector<20x512xf32>
    %51 = arith.select %48, %46, %50 : vector<20x512xi1>, vector<20x512xf32>
    %52 = vector.extract_strided_slice %51 {offsets = [0, 0], sizes = [20, 256], strides = [1, 1]} : vector<20x512xf32> to vector<20x256xf32>
    %53 = vector.extract_strided_slice %51 {offsets = [0, 256], sizes = [20, 256], strides = [1, 1]} : vector<20x512xf32> to vector<20x256xf32>
    %54 = arith.subf %52, %53 : vector<20x256xf32>
    %c0_35 = arith.constant 0 : index
    %c0_36 = arith.constant 0 : index
    %55 = vector.load %arg11[%c0_35, %c0_36] : memref<1x20xf32, #tpu.memory_space<vmem>>, vector<1x20xf32>
    %cst_37 = arith.constant dense<0.000000e+00> : vector<1x256xf32>
    %56 = tpu.matmul %55, %54, %cst_37 {dimension_numbers = #tpu.dot_dimension_numbers<[1], [0], [0], [1], [0, 0, 1, 1], [], []>} : vector<1x20xf32>, vector<20x256xf32>, vector<1x256xf32> -> vector<1x256xf32>
    %c0_38 = arith.constant 0 : index
    %c0_39 = arith.constant 0 : index
    %57 = vector.load %arg12[%c0_38, %c0_39] : memref<1x256xf32, #tpu.memory_space<vmem>>, vector<1x256xf32>
    tpu.vector_store %arg12[%c0_38, %c0_39], %56 {strides = array<i32>} : memref<1x256xf32, #tpu.memory_space<vmem>>, vector<1x256xf32>,
    return
  }
  func.func @transform_0(%arg0: i32) -> (i32, i32) {
    %c0_i32 = arith.constant 0 : i32
    %c0_i32_0 = arith.constant 0 : i32
    return %c0_i32, %arg0 : i32, i32
  }
  func.func @transform_1(%arg0: i32) -> (i32, i32) {
    %c0_i32 = arith.constant 0 : i32
    %c0_i32_0 = arith.constant 0 : i32
    %c0_i32_1 = arith.constant 0 : i32
    return %c0_i32, %c0_i32_0 : i32, i32
  }
  func.func @transform_2(%arg0: i32) -> (i32, i32) {
    %c0_i32 = arith.constant 0 : i32
    %c0_i32_0 = arith.constant 0 : i32
    %c0_i32_1 = arith.constant 0 : i32
    return %c0_i32, %c0_i32_0 : i32, i32
  }
  func.func @transform_3(%arg0: i32) -> (i32, i32) {
    %c0_i32 = arith.constant 0 : i32
    %c0_i32_0 = arith.constant 0 : i32
    %c0_i32_1 = arith.constant 0 : i32
    return %c0_i32, %c0_i32_0 : i32, i32
  }
  func.func @transform_4(%arg0: i32) -> (i32, i32) {
    %c0_i32 = arith.constant 0 : i32
    %c0_i32_0 = arith.constant 0 : i32
    %c0_i32_1 = arith.constant 0 : i32
    return %c0_i32, %c0_i32_0 : i32, i32
  }
  func.func @transform_5(%arg0: i32) -> (i32, i32) {
    %c0_i32 = arith.constant 0 : i32
    %c0_i32_0 = arith.constant 0 : i32
    %c0_i32_1 = arith.constant 0 : i32
    return %c0_i32, %c0_i32_0 : i32, i32
  }
  func.func @transform_6(%arg0: i32) -> (i32, i32) {
    %c0_i32 = arith.constant 0 : i32
    %c0_i32_0 = arith.constant 0 : i32
    %c0_i32_1 = arith.constant 0 : i32
    return %c0_i32, %c0_i32_0 : i32, i32
  }
  func.func @transform_7(%arg0: i32) -> (i32, i32) {
    %c0_i32 = arith.constant 0 : i32
    %c0_i32_0 = arith.constant 0 : i32
    %c0_i32_1 = arith.constant 0 : i32
    return %c0_i32, %c0_i32_0 : i32, i32
  }
  func.func @transform_8(%arg0: i32) -> (i32, i32) {
    %c0_i32 = arith.constant 0 : i32
    %c0_i32_0 = arith.constant 0 : i32
    %c0_i32_1 = arith.constant 0 : i32
    return %c0_i32, %c0_i32_0 : i32, i32
  }
  func.func @transform_9(%arg0: i32) -> (i32, i32) {
    %c0_i32 = arith.constant 0 : i32
    %c0_i32_0 = arith.constant 0 : i32
    %c0_i32_1 = arith.constant 0 : i32
    return %c0_i32, %c0_i32_0 : i32, i32
  }
  func.func @transform_10(%arg0: i32) -> (i32, i32) {
    %c0_i32 = arith.constant 0 : i32
    %c0_i32_0 = arith.constant 0 : i32
    %c0_i32_1 = arith.constant 0 : i32
    return %c0_i32, %c0_i32_0 : i32, i32
  }
  func.func @transform_11(%arg0: i32) -> (i32, i32) {
    %c0_i32 = arith.constant 0 : i32
    %c0_i32_0 = arith.constant 0 : i32
    return %c0_i32, %arg0 : i32, i32
  }
}

</mosaic_0001>

<llo_original>
// kernel: tpu_custom_call.1
$region0: #{tpu_custom_call.1}
  #allocation0 [shape = 'u32[]', space=smem, size = 0x4, offset = 0x4, fixed_abs, tag = 'smem constant byte address 0x4 - core index']
  #allocation1 [shape = 'u32[144,128]{1,0:T(1,128)}', space=vmem, size = 0x12000, scoped, tag = 'internal scratch']
  %s0 = inlined_call_operand.vmem [shape: f32[14,512], index: 0, kind: input, shape index: {}]
  %s1 = inlined_call_operand.vmem [shape: f32[80,14], index: 1, kind: input, shape index: {}]
  %s2 = inlined_call_operand.vmem [shape: f32[80,14], index: 2, kind: input, shape index: {}]
  %s3 = inlined_call_operand.vmem [shape: f32[80,1], index: 3, kind: input, shape index: {}]
  %s4 = inlined_call_operand.vmem [shape: f32[80,80], index: 4, kind: input, shape index: {}]
  %s5 = inlined_call_operand.vmem [shape: f32[80,1], index: 5, kind: input, shape index: {}]
  %s6 = inlined_call_operand.vmem [shape: f32[40,80], index: 6, kind: input, shape index: {}]
  %s7 = inlined_call_operand.vmem [shape: f32[40,1], index: 7, kind: input, shape index: {}]
  %s8 = inlined_call_operand.vmem [shape: f32[20,40], index: 8, kind: input, shape index: {}]
  %s9 = inlined_call_operand.vmem [shape: f32[20,1], index: 9, kind: input, shape index: {}]
  %s10 = inlined_call_operand.vmem [shape: f32[1,20], index: 10, kind: input, shape index: {}]
  %s11 = inlined_call_operand.hbm [shape: f32[1,512], index: 11, kind: output, shape index: {}]
  %s12 = sld [smem:[#allocation0]]
  $region100: #{tpu_custom_call.1} parent=0
    _
  %s14 = ssub.s32 1, %s12
  %s15 = scalar_select 0, %s14, %s12
  $region1: #{tpu_custom_call.1} parent=0
    #allocation2 [shape = 'u8[32768]{0}', space=vmem, size = 0x8000, scoped, tag = 'input window, operand 0']
    #allocation3 [shape = 'u8[2048]{0}', space=vmem, size = 0x800, scoped, tag = 'output window, operand 0']
    #allocation4 [shape = 's32[2]{0}', space=sflag, size = 0x8, scoped, tag = 'scoped memory for tpu_custom_call.1']
    %16 = vsyncpa [#allocation4], 0
    %s17 = scalar_lea.sflag [#allocation4], 1
    %18 = vsyncpa %s17, 0
    loop: start=0, step=1, limit=4
    $region2: #{tpu_custom_call.1} parent=1 // loop_pre_header
      _
    $region3: #{tpu_custom_call.1} parent=1 // loop_header
      %s20 = sphi 0, %s24
      %p21 = scmp.ge.s32.totalorder %s20, 4
      %s30 = sphi 0, %s32
      %s33 = sphi 0, %s30
      %s34 = sphi 0, %s33
      %s50 = sphi 0, %s34
      %s54 = sphi 0, %s54
      %s56 = sphi 0, %s54
      %s57 = sphi 0, %s56
      %s71 = sphi 0, %s57
      %s75 = sphi 0, %s75
      %s77 = sphi 0, %s75
      %s78 = sphi 0, %s77
      %s92 = sphi 0, %s78
      %s96 = sphi 0, %s96
      %s98 = sphi 0, %s96
      %s99 = sphi 0, %s98
      %s113 = sphi 0, %s99
      %s117 = sphi 0, %s117
      %s119 = sphi 0, %s117
      %s120 = sphi 0, %s119
      %s134 = sphi 0, %s120
      %s138 = sphi 0, %s138
      %s140 = sphi 0, %s138
      %s141 = sphi 0, %s140
      %s155 = sphi 0, %s141
      %s159 = sphi 0, %s159
      %s161 = sphi 0, %s159
      %s162 = sphi 0, %s161
      %s176 = sphi 0, %s162
      %s180 = sphi 0, %s180
      %s182 = sphi 0, %s180
      %s183 = sphi 0, %s182
      %s197 = sphi 0, %s183
      %s201 = sphi 0, %s201
      %s203 = sphi 0, %s201
      %s204 = sphi 0, %s203
      %s218 = sphi 0, %s204
      %s222 = sphi 0, %s222
      %s224 = sphi 0, %s222
      %s225 = sphi 0, %s224
      %s239 = sphi 0, %s225
      %s243 = sphi 0, %s243
      %s245 = sphi 0, %s243
      %s246 = sphi 0, %s245
      %s260 = sphi 0, %s246
      %s266 = sphi 0, %s268
      %s269 = sphi 0, %s266
      %s270 = sphi 0, %s269
      %s286 = sphi 0, %s270
    $region4: #{tpu_custom_call.1} parent=1 // loop_header_branch
      %23 = sbr.rel (%p21) target = $region8
    $region5: #{tpu_custom_call.1} parent=1 // loop_body
      %s25 = ssub.s32 %s20, 1
      %s26 = ssub.s32 %s20, 2
      %s27 = sadd.s32 %s20, 1
      %s28 = ssub.s32 %s20, %s27
      %p29 = scmp.eq.s32.totalorder %s28, 0
      %s31 = sadd.s32 %s30, 1
      %s32 = scalar_select %p29, %s30, %s31
      %p35 = pneg %p29
      %p36 = scmp.eq.s32.totalorder %s20, 1
      %p37 = por %p35, %p36
      %p38 = scmp.ne.s32.totalorder %s30, %s33
      %p39 = scmp.eq.s32.totalorder %s20, 0
      %p40 = por %p38, %p39
      %p41 = scmp.ne.s32.totalorder %s30, %s33
      %p42 = scmp.eq.s32.totalorder %s25, 1
      %p43 = por %p41, %p42
      %p44 = scmp.ne.s32.totalorder %s33, %s34
      %p45 = scmp.eq.s32.totalorder %s25, 0
      %p46 = por %p44, %p45
      %p47 = scmp.ne.s32.totalorder %s33, %s34
      %p48 = scmp.eq.s32.totalorder %s26, 1
      %p49 = por %p47, %p48
      %p51 = scmp.ne.s32.totalorder %s34, %s50
      %p52 = scmp.eq.s32.totalorder %s26, 0
      %p53 = por %p51, %p52
      %s55 = sadd.s32 %s54, 1
      %p58 = scmp.eq.s32.totalorder %s20, 1
      %p59 = scmp.ne.s32.totalorder %s54, %s56
      %p60 = scmp.eq.s32.totalorder %s20, 0
      %p61 = por %p59, %p60
      %p62 = scmp.ne.s32.totalorder %s54, %s56
      %p63 = scmp.eq.s32.totalorder %s25, 1
      %p64 = por %p62, %p63
      %p65 = scmp.ne.s32.totalorder %s56, %s57
      %p66 = scmp.eq.s32.totalorder %s25, 0
      %p67 = por %p65, %p66
      %p68 = scmp.ne.s32.totalorder %s56, %s57
      %p69 = scmp.eq.s32.totalorder %s26, 1
      %p70 = por %p68, %p69
      %p72 = scmp.ne.s32.totalorder %s57, %s71
      %p73 = scmp.eq.s32.totalorder %s26, 0
      %p74 = por %p72, %p73
      %s76 = sadd.s32 %s75, 1
      %p79 = scmp.eq.s32.totalorder %s20, 1
      %p80 = scmp.ne.s32.totalorder %s75, %s77
      %p81 = scmp.eq.s32.totalorder %s20, 0
      %p82 = por %p80, %p81
      %p83 = scmp.ne.s32.totalorder %s75, %s77
      %p84 = scmp.eq.s32.totalorder %s25, 1
      %p85 = por %p83, %p84
      %p86 = scmp.ne.s32.totalorder %s77, %s78
      %p87 = scmp.eq.s32.totalorder %s25, 0
      %p88 = por %p86, %p87
      %p89 = scmp.ne.s32.totalorder %s77, %s78
      %p90 = scmp.eq.s32.totalorder %s26, 1
      %p91 = por %p89, %p90
      %p93 = scmp.ne.s32.totalorder %s78, %s92
      %p94 = scmp.eq.s32.totalorder %s26, 0
      %p95 = por %p93, %p94
      %s97 = sadd.s32 %s96, 1
      %p100 = scmp.eq.s32.totalorder %s20, 1
      %p101 = scmp.ne.s32.totalorder %s96, %s98
      %p102 = scmp.eq.s32.totalorder %s20, 0
      %p103 = por %p101, %p102
      %p104 = scmp.ne.s32.totalorder %s96, %s98
      %p105 = scmp.eq.s32.totalorder %s25, 1
      %p106 = por %p104, %p105
      %p107 = scmp.ne.s32.totalorder %s98, %s99
      %p108 = scmp.eq.s32.totalorder %s25, 0
      %p109 = por %p107, %p108
      %p110 = scmp.ne.s32.totalorder %s98, %s99
      %p111 = scmp.eq.s32.totalorder %s26, 1
      %p112 = por %p110, %p111
      %p114 = scmp.ne.s32.totalorder %s99, %s113
      %p115 = scmp.eq.s32.totalorder %s26, 0
      %p116 = por %p114, %p115
      %s118 = sadd.s32 %s117, 1
      %p121 = scmp.eq.s32.totalorder %s20, 1
      %p122 = scmp.ne.s32.totalorder %s117, %s119
      %p123 = scmp.eq.s32.totalorder %s20, 0
      %p124 = por %p122, %p123
      %p125 = scmp.ne.s32.totalorder %s117, %s119
      %p126 = scmp.eq.s32.totalorder %s25, 1
      %p127 = por %p125, %p126
      %p128 = scmp.ne.s32.totalorder %s119, %s120
      %p129 = scmp.eq.s32.totalorder %s25, 0
      %p130 = por %p128, %p129
      %p131 = scmp.ne.s32.totalorder %s119, %s120
      %p132 = scmp.eq.s32.totalorder %s26, 1
      %p133 = por %p131, %p132
      %p135 = scmp.ne.s32.totalorder %s120, %s134
      %p136 = scmp.eq.s32.totalorder %s26, 0
      %p137 = por %p135, %p136
      %s139 = sadd.s32 %s138, 1
      %p142 = scmp.eq.s32.totalorder %s20, 1
      %p143 = scmp.ne.s32.totalorder %s138, %s140
      %p144 = scmp.eq.s32.totalorder %s20, 0
      %p145 = por %p143, %p144
      %p146 = scmp.ne.s32.totalorder %s138, %s140
      %p147 = scmp.eq.s32.totalorder %s25, 1
      %p148 = por %p146, %p147
      %p149 = scmp.ne.s32.totalorder %s140, %s141
      %p150 = scmp.eq.s32.totalorder %s25, 0
      %p151 = por %p149, %p150
      %p152 = scmp.ne.s32.totalorder %s140, %s141
      %p153 = scmp.eq.s32.totalorder %s26, 1
      %p154 = por %p152, %p153
      %p156 = scmp.ne.s32.totalorder %s141, %s155
      %p157 = scmp.eq.s32.totalorder %s26, 0
      %p158 = por %p156, %p157
      %s160 = sadd.s32 %s159, 1
      %p163 = scmp.eq.s32.totalorder %s20, 1
      %p164 = scmp.ne.s32.totalorder %s159, %s161
      %p165 = scmp.eq.s32.totalorder %s20, 0
      %p166 = por %p164, %p165
      %p167 = scmp.ne.s32.totalorder %s159, %s161
      %p168 = scmp.eq.s32.totalorder %s25, 1
      %p169 = por %p167, %p168
      %p170 = scmp.ne.s32.totalorder %s161, %s162
      %p171 = scmp.eq.s32.totalorder %s25, 0
      %p172 = por %p170, %p171
      %p173 = scmp.ne.s32.totalorder %s161, %s162
      %p174 = scmp.eq.s32.totalorder %s26, 1
      %p175 = por %p173, %p174
      %p177 = scmp.ne.s32.totalorder %s162, %s176
      %p178 = scmp.eq.s32.totalorder %s26, 0
      %p179 = por %p177, %p178
      %s181 = sadd.s32 %s180, 1
      %p184 = scmp.eq.s32.totalorder %s20, 1
      %p185 = scmp.ne.s32.totalorder %s180, %s182
      %p186 = scmp.eq.s32.totalorder %s20, 0
      %p187 = por %p185, %p186
      %p188 = scmp.ne.s32.totalorder %s180, %s182
      %p189 = scmp.eq.s32.totalorder %s25, 1
      %p190 = por %p188, %p189
      %p191 = scmp.ne.s32.totalorder %s182, %s183
      %p192 = scmp.eq.s32.totalorder %s25, 0
      %p193 = por %p191, %p192
      %p194 = scmp.ne.s32.totalorder %s182, %s183
      %p195 = scmp.eq.s32.totalorder %s26, 1
      %p196 = por %p194, %p195
      %p198 = scmp.ne.s32.totalorder %s183, %s197
      %p199 = scmp.eq.s32.totalorder %s26, 0
      %p200 = por %p198, %p199
      %s202 = sadd.s32 %s201, 1
      %p205 = scmp.eq.s32.totalorder %s20, 1
      %p206 = scmp.ne.s32.totalorder %s201, %s203
      %p207 = scmp.eq.s32.totalorder %s20, 0
      %p208 = por %p206, %p207
      %p209 = scmp.ne.s32.totalorder %s201, %s203
      %p210 = scmp.eq.s32.totalorder %s25, 1
      %p211 = por %p209, %p210
      %p212 = scmp.ne.s32.totalorder %s203, %s204
      %p213 = scmp.eq.s32.totalorder %s25, 0
      %p214 = por %p212, %p213
      %p215 = scmp.ne.s32.totalorder %s203, %s204
      %p216 = scmp.eq.s32.totalorder %s26, 1
      %p217 = por %p215, %p216
      %p219 = scmp.ne.s32.totalorder %s204, %s218
      %p220 = scmp.eq.s32.totalorder %s26, 0
      %p221 = por %p219, %p220
      %s223 = sadd.s32 %s222, 1
      %p226 = scmp.eq.s32.totalorder %s20, 1
      %p227 = scmp.ne.s32.totalorder %s222, %s224
      %p228 = scmp.eq.s32.totalorder %s20, 0
      %p229 = por %p227, %p228
      %p230 = scmp.ne.s32.totalorder %s222, %s224
      %p231 = scmp.eq.s32.totalorder %s25, 1
      %p232 = por %p230, %p231
      %p233 = scmp.ne.s32.totalorder %s224, %s225
      %p234 = scmp.eq.s32.totalorder %s25, 0
      %p235 = por %p233, %p234
      %p236 = scmp.ne.s32.totalorder %s224, %s225
      %p237 = scmp.eq.s32.totalorder %s26, 1
      %p238 = por %p236, %p237
      %p240 = scmp.ne.s32.totalorder %s225, %s239
      %p241 = scmp.eq.s32.totalorder %s26, 0
      %p242 = por %p240, %p241
      %s244 = sadd.s32 %s243, 1
      %p247 = scmp.eq.s32.totalorder %s20, 1
      %p248 = scmp.ne.s32.totalorder %s243, %s245
      %p249 = scmp.eq.s32.totalorder %s20, 0
      %p250 = por %p248, %p249
      %p251 = scmp.ne.s32.totalorder %s243, %s245
      %p252 = scmp.eq.s32.totalorder %s25, 1
      %p253 = por %p251, %p252
      %p254 = scmp.ne.s32.totalorder %s245, %s246
      %p255 = scmp.eq.s32.totalorder %s25, 0
      %p256 = por %p254, %p255
      %p257 = scmp.ne.s32.totalorder %s245, %s246
      %p258 = scmp.eq.s32.totalorder %s26, 1
      %p259 = por %p257, %p258
      %p261 = scmp.ne.s32.totalorder %s246, %s260
      %p262 = scmp.eq.s32.totalorder %s26, 0
      %p263 = por %p261, %p262
      %s264 = ssub.s32 %s20, %s27
      %p265 = scmp.eq.s32.totalorder %s264, 0
      %s267 = sadd.s32 %s266, 1
      %s268 = scalar_select %p265, %s266, %s267
      %p271 = pneg %p265
      %p272 = scmp.eq.s32.totalorder %s20, 1
      %p273 = por %p271, %p272
      %p274 = scmp.ne.s32.totalorder %s266, %s269
      %p275 = scmp.eq.s32.totalorder %s20, 0
      %p276 = por %p274, %p275
      %p277 = scmp.ne.s32.totalorder %s266, %s269
      %p278 = scmp.eq.s32.totalorder %s25, 1
      %p279 = por %p277, %p278
      %p280 = scmp.ne.s32.totalorder %s269, %s270
      %p281 = scmp.eq.s32.totalorder %s25, 0
      %p282 = por %p280, %p281
      %p283 = scmp.ne.s32.totalorder %s269, %s270
      %p284 = scmp.eq.s32.totalorder %s26, 1
      %p285 = por %p283, %p284
      %p287 = scmp.ne.s32.totalorder %s270, %s286
      %p288 = scmp.eq.s32.totalorder %s26, 0
      %p289 = por %p287, %p288
      %p290 = scmp.le.s32.totalorder 1, %s20
      %p291 = scmp.lt.s32.totalorder %s20, 3
      %p292 = pnand %p290, %p291
      %p293 = pneg %p292
      // Predicated region
      $region9: #{tpu_custom_call.1} parent=5 // pred_check
        _
      $region10: #{tpu_custom_call.1} parent=5 // pred_check_branch
        %295 = sbr.rel (%p292) target = $region12
      $region11: #{tpu_custom_call.1} parent=5 // pred_region
        %s296 = ssub.s32 %s20, 1
        // Predicated region
        $region13: #{tpu_custom_call.1} parent=11 // pred_check
          %p297 = pneg %p67
        $region14: #{tpu_custom_call.1} parent=11 // pred_check_branch
          %299 = sbr.rel (%p297) target = $region16
        $region15: #{tpu_custom_call.1} parent=11 // pred_region
          _
        $region16: #{tpu_custom_call.1} parent=11 // pred_fallthru
          _
        // Predicated region
        $region17: #{tpu_custom_call.1} parent=11 // pred_check
          %p300 = pneg %p88
        $region18: #{tpu_custom_call.1} parent=11 // pred_check_branch
          %302 = sbr.rel (%p300) target = $region20
        $region19: #{tpu_custom_call.1} parent=11 // pred_region
          _
        $region20: #{tpu_custom_call.1} parent=11 // pred_fallthru
          _
        // Predicated region
        $region21: #{tpu_custom_call.1} parent=11 // pred_check
          %p303 = pneg %p109
        $region22: #{tpu_custom_call.1} parent=11 // pred_check_branch
          %305 = sbr.rel (%p303) target = $region24
        $region23: #{tpu_custom_call.1} parent=11 // pred_region
          _
        $region24: #{tpu_custom_call.1} parent=11 // pred_fallthru
          _
        // Predicated region
        $region25: #{tpu_custom_call.1} parent=11 // pred_check
          %p306 = pneg %p130
        $region26: #{tpu_custom_call.1} parent=11 // pred_check_branch
          %308 = sbr.rel (%p306) target = $region28
        $region27: #{tpu_custom_call.1} parent=11 // pred_region
          _
        $region28: #{tpu_custom_call.1} parent=11 // pred_fallthru
          _
        // Predicated region
        $region29: #{tpu_custom_call.1} parent=11 // pred_check
          %p309 = pneg %p151
        $region30: #{tpu_custom_call.1} parent=11 // pred_check_branch
          %311 = sbr.rel (%p309) target = $region32
        $region31: #{tpu_custom_call.1} parent=11 // pred_region
          _
        $region32: #{tpu_custom_call.1} parent=11 // pred_fallthru
          _
        // Predicated region
        $region33: #{tpu_custom_call.1} parent=11 // pred_check
          %p312 = pneg %p172
        $region34: #{tpu_custom_call.1} parent=11 // pred_check_branch
          %314 = sbr.rel (%p312) target = $region36
        $region35: #{tpu_custom_call.1} parent=11 // pred_region
          _
        $region36: #{tpu_custom_call.1} parent=11 // pred_fallthru
          _
        // Predicated region
        $region37: #{tpu_custom_call.1} parent=11 // pred_check
          %p315 = pneg %p193
        $region38: #{tpu_custom_call.1} parent=11 // pred_check_branch
          %317 = sbr.rel (%p315) target = $region40
        $region39: #{tpu_custom_call.1} parent=11 // pred_region
          _
        $region40: #{tpu_custom_call.1} parent=11 // pred_fallthru
          _
        // Predicated region
        $region41: #{tpu_custom_call.1} parent=11 // pred_check
          %p318 = pneg %p214
        $region42: #{tpu_custom_call.1} parent=11 // pred_check_branch
          %320 = sbr.rel (%p318) target = $region44
        $region43: #{tpu_custom_call.1} parent=11 // pred_region
          _
        $region44: #{tpu_custom_call.1} parent=11 // pred_fallthru
          _
        // Predicated region
        $region45: #{tpu_custom_call.1} parent=11 // pred_check
          %p321 = pneg %p235
        $region46: #{tpu_custom_call.1} parent=11 // pred_check_branch
          %323 = sbr.rel (%p321) target = $region48
        $region47: #{tpu_custom_call.1} parent=11 // pred_region
          _
        $region48: #{tpu_custom_call.1} parent=11 // pred_fallthru
          _
        // Predicated region
        $region49: #{tpu_custom_call.1} parent=11 // pred_check
          %p324 = pneg %p256
        $region50: #{tpu_custom_call.1} parent=11 // pred_check_branch
          %326 = sbr.rel (%p324) target = $region52
        $region51: #{tpu_custom_call.1} parent=11 // pred_region
          _
        $region52: #{tpu_custom_call.1} parent=11 // pred_fallthru
          _
      $region12: #{tpu_custom_call.1} parent=5 // pred_fallthru
        _
      %p327 = scmp.lt.s32.totalorder %s20, 2
      // Predicated region
      $region53: #{tpu_custom_call.1} parent=5 // pred_check
        %p328 = pneg %p327
      $region54: #{tpu_custom_call.1} parent=5 // pred_check_branch
        %330 = sbr.rel (%p328) target = $region56
      $region55: #{tpu_custom_call.1} parent=5 // pred_region
        // Predicated region
        $region57: #{tpu_custom_call.1} parent=55 // pred_check
          %p331 = pneg %p40
        $region58: #{tpu_custom_call.1} parent=55 // pred_check_branch
          %333 = sbr.rel (%p331) target = $region60
        $region59: #{tpu_custom_call.1} parent=55 // pred_region
          %s334 = sand.u32 %s30, 1
          %s335 = sand.u32 %s30, 1
          %s336 = smul.addr %s335, 32
          %s337 = scalar_lea.vmem [#allocation2], %s336
          %s338 = smul.u32 2, %s20
          %s339 = smul.addr %s338, 8
          %s340 = scalar_lea.vmem %s0, %s339
          // Predicated region
          $region61: #{tpu_custom_call.1} parent=59 // pred_check
            _
          $region62: #{tpu_custom_call.1} parent=59 // pred_check_branch
            %342 = sbr.rel (0) target = $region64
          $region63: #{tpu_custom_call.1} parent=59 // pred_region
            // Predicated region
            $region65: #{tpu_custom_call.1} parent=63 // pred_check
              _
            $region66: #{tpu_custom_call.1} parent=63 // pred_check_branch
              %344 = sbr.rel (0) target = $region68
            $region67: #{tpu_custom_call.1} parent=63 // pred_region
              loop: start=0, step=1, limit=1
              $region69: #{tpu_custom_call.1} parent=67 // loop_pre_header
                _
              $region70: #{tpu_custom_call.1} parent=67 // loop_header
                %s346 = sphi 0, %s350
                %p347 = scmp.ge.s32.totalorder %s346, 1
                %s351 = sphi %s340, %s340
                %s352 = sphi %s337, %s337
              $region71: #{tpu_custom_call.1} parent=67 // loop_header_branch
                %349 = sbr.rel (%p347) target = $region75
              $region72: #{tpu_custom_call.1} parent=67 // loop_body
                %v353 = vld [vmem:[%s351] sm:$0xff]
                %354 = vst [vmem:[%s352] sm:$0xff] %v353
                %v355 = vld [vmem:[%s351 + $0x8] sm:$0xff]
                %356 = vst [vmem:[%s352 + $0x8] sm:$0xff] %v355
                %v357 = vld [vmem:[%s351 + $0x20] sm:$0xff]
                %358 = vst [vmem:[%s352 + $0x10] sm:$0xff] %v357
                %v359 = vld [vmem:[%s351 + $0x28] sm:$0xff]
                %360 = vst [vmem:[%s352 + $0x18] sm:$0xff] %v359
              $region73: #{tpu_custom_call.1} parent=67 // loop_footer
                %s350 = sadd.s32 1, %s346
              $region74: #{tpu_custom_call.1} parent=67 // loop_footer_branch
                %345 = sbr.rel target = $region70
              $region75: #{tpu_custom_call.1} parent=67 // loop_exit
                _
            $region68: #{tpu_custom_call.1} parent=63 // pred_fallthru
              _
            // Predicated region
            $region76: #{tpu_custom_call.1} parent=63 // pred_check
              _
            $region77: #{tpu_custom_call.1} parent=63 // pred_check_branch
              %362 = sbr.rel target = $region79
            $region78: #{tpu_custom_call.1} parent=63 // pred_region
              _
            $region79: #{tpu_custom_call.1} parent=63 // pred_fallthru
              _
          $region64: #{tpu_custom_call.1} parent=59 // pred_fallthru
            _
          %363 = vnop
        $region60: #{tpu_custom_call.1} parent=55 // pred_fallthru
          _
      $region56: #{tpu_custom_call.1} parent=5 // pred_fallthru
        _
      %p364 = scmp.le.s32.totalorder 1, %s20
      %p365 = scmp.lt.s32.totalorder %s20, 3
      %p366 = pnand %p364, %p365
      %p367 = pneg %p366
      // Predicated region
      $region80: #{tpu_custom_call.1} parent=5 // pred_check
        _
      $region81: #{tpu_custom_call.1} parent=5 // pred_check_branch
        %369 = sbr.rel (%p366) target = $region83
      $region82: #{tpu_custom_call.1} parent=5 // pred_region
        %s370 = ssub.s32 %s20, 1
        %s371 = sand.u32 %s33, 1
        %s372 = sand.u32 %s33, 1
        %s373 = smul.addr %s372, 32
        %s374 = scalar_lea.vmem [#allocation2], %s373
        // Predicated region
        $region84: #{tpu_custom_call.1} parent=82 // pred_check
          %p375 = pneg %p46
        $region85: #{tpu_custom_call.1} parent=82 // pred_check_branch
          %377 = sbr.rel (%p375) target = $region87
        $region86: #{tpu_custom_call.1} parent=82 // pred_region
          _
        $region87: #{tpu_custom_call.1} parent=82 // pred_fallthru
          _
        %s378 = sand.u32 %s33, 1
        %s379 = sand.u32 %s33, 1
        %s380 = smul.addr %s379, 32
        %s381 = scalar_lea.vmem [#allocation2], %s380
        %p382 = pneg %p46
        %p383 = pneg %p43
        %p384 = pneg %p67
        %p385 = pneg %p64
        %p386 = pneg %p88
        %p387 = pneg %p85
        %p388 = pneg %p109
        %p389 = pneg %p106
        %p390 = pneg %p130
        %p391 = pneg %p127
        %p392 = pneg %p151
        %p393 = pneg %p148
        %p394 = pneg %p172
        %p395 = pneg %p169
        %p396 = pneg %p193
        %p397 = pneg %p190
        %p398 = pneg %p214
        %p399 = pneg %p211
        %p400 = pneg %p235
        %p401 = pneg %p232
        %p402 = pneg %p256
        %p403 = pneg %p253
        %p404 = pneg %p282
        %p405 = pneg %p279
        %s406 = sand.u32 %s269, 1
        %s407 = scalar_lea.sflag [#allocation4], %s406
        %s408 = sand.u32 %s269, 1
        %s409 = smul.addr %s408, 2
        %s410 = scalar_lea.vmem [#allocation3], %s409
        %s411 = smul.u32 2, %s25
        %s412 = smul.u32 2, %s25
        %v413 = vld [vmem:[%s374] sm:$0xff]
        %v414 = vld [vmem:[%s374 + $0x8] sm:$0xff]
        %v415 = vld [vmem:[%s374 + $0x10] sm:$0x3f]
        %v416 = vld [vmem:[%s374 + $0x18] sm:$0x3f]
        %v417 = vld [vmem:[%s1] sm:$0xff]
        %v418 = vld [vmem:[%s1 + $0x8] sm:$0xff]
        %v419 = vld [vmem:[%s1 + $0x10] sm:$0xff]
        %v420 = vld [vmem:[%s1 + $0x18] sm:$0xff]
        %v421 = vld [vmem:[%s1 + $0x20] sm:$0xff]
        %v422 = vld [vmem:[%s1 + $0x28] sm:$0xff]
        %v423 = vld [vmem:[%s1 + $0x30] sm:$0xff]
        %v424 = vld [vmem:[%s1 + $0x38] sm:$0xff]
        %v425 = vld [vmem:[%s1 + $0x40] sm:$0xff]
        %v426 = vld [vmem:[%s1 + $0x48] sm:$0xff]
        %v427 = vld [vmem:[%s3] sm:$0xff]
        %v428 = vld [vmem:[%s3 + $0x8] sm:$0xff]
        %v429 = vld [vmem:[%s3 + $0x10] sm:$0xff]
        %v430 = vld [vmem:[%s3 + $0x18] sm:$0xff]
        %v431 = vld [vmem:[%s3 + $0x20] sm:$0xff]
        %v432 = vld [vmem:[%s3 + $0x28] sm:$0xff]
        %v433 = vld [vmem:[%s3 + $0x30] sm:$0xff]
        %v434 = vld [vmem:[%s3 + $0x38] sm:$0xff]
        %v435 = vld [vmem:[%s3 + $0x40] sm:$0xff]
        %v436 = vld [vmem:[%s3 + $0x48] sm:$0xff]
        %438 = vset.pattern.permute.xlu0 0
        %439 = vperm.xlu0 %438, %v427
        %v440 = vpop.permute.xlu0 %439
        %443 = vset.pattern.permute.xlu0 0
        %444 = vperm.xlu0 %443, %v428
        %v445 = vpop.permute.xlu0 %444
        %448 = vset.pattern.permute.xlu0 0
        %449 = vperm.xlu0 %448, %v429
        %v450 = vpop.permute.xlu0 %449
        %453 = vset.pattern.permute.xlu0 0
        %454 = vperm.xlu0 %453, %v430
        %v455 = vpop.permute.xlu0 %454
        %458 = vset.pattern.permute.xlu0 0
        %459 = vperm.xlu0 %458, %v431
        %v460 = vpop.permute.xlu0 %459
        %463 = vset.pattern.permute.xlu0 0
        %464 = vperm.xlu0 %463, %v432
        %v465 = vpop.permute.xlu0 %464
        %468 = vset.pattern.permute.xlu0 0
        %469 = vperm.xlu0 %468, %v433
        %v470 = vpop.permute.xlu0 %469
        %473 = vset.pattern.permute.xlu0 0
        %474 = vperm.xlu0 %473, %v434
        %v475 = vpop.permute.xlu0 %474
        %478 = vset.pattern.permute.xlu0 0
        %479 = vperm.xlu0 %478, %v435
        %v480 = vpop.permute.xlu0 %479
        %483 = vset.pattern.permute.xlu0 0
        %484 = vperm.xlu0 %483, %v436
        %v485 = vpop.permute.xlu0 %484
        %vm487 = vcmask 113664
        %v489 = vsel %vm487, %v417, 0
        %v492 = vsel %vm487, %v418, 0
        %v495 = vsel %vm487, %v419, 0
        %v498 = vsel %vm487, %v420, 0
        %v501 = vsel %vm487, %v421, 0
        %v504 = vsel %vm487, %v422, 0
        %v507 = vsel %vm487, %v423, 0
        %v510 = vsel %vm487, %v424, 0
        %v513 = vsel %vm487, %v425, 0
        %v516 = vsel %vm487, %v426, 0
        %vm518 = vcmask 1045504
        %v520 = vsel %vm518, %v415, 0
        %v523 = vsel %vm518, %v416, 0
        %525 = vmatprep.subr.mxu0 %v414
        %526 = vmatpush1.msra.mxu0 %v413
        %527 = vmatprep.subr.mxu0 %v523
        %528 = vmatpush1.msra.mxu0 %v520
        %529 = vmatprep.subr.mxu0 0.0
        %530 = vmatpush1.msra.mxu0 0.0
        %531 = vmatprep.subr.mxu0 0.0
        %532 = vmatpush1.msra.mxu0 0.0
        %533 = vmatprep.subr.mxu0 0.0
        %534 = vmatpush1.msra.mxu0 0.0
        %535 = vmatprep.subr.mxu0 0.0
        %536 = vmatpush1.msra.mxu0 0.0
        %537 = vmatprep.subr.mxu0 0.0
        %538 = vmatpush1.msra.mxu0 0.0
        %539 = vmatprep.subr.mxu0 0.0
        %540 = vmatpush1.msra.mxu0 0.0
        %541 = vmatprep.subr.mxu0 0.0
        %542 = vmatpush1.msra.mxu0 0.0
        %543 = vmatprep.subr.mxu0 0.0
        %544 = vmatpush1.msra.mxu0 0.0
        %545 = vmatprep.subr.mxu0 0.0
        %546 = vmatpush1.msra.mxu0 0.0
        %547 = vmatprep.subr.mxu0 0.0
        %548 = vmatpush1.msra.mxu0 0.0
        %549 = vmatprep.subr.mxu0 0.0
        %550 = vmatpush1.msra.mxu0 0.0
        %551 = vmatprep.subr.mxu0 0.0
        %552 = vmatpush1.msra.mxu0 0.0
        %553 = vmatprep.subr.mxu0 0.0
        %554 = vmatpush1.msra.mxu0 0.0
        %555 = vmatprep.subr.mxu0 0.0
        %556 = vmatpush1.msra.mxu0 0.0
        %557 = vmatprep.subr.mxu0 0.0
        %558 = vmatpush1.msra.mxu0 0.0
        %559 = vmatprep.subr.mxu0 0.0
        %560 = vmatpush1.msra.mxu0 0.0
        %561 = vmatprep.subr.mxu0 0.0
        %562 = vmatpush1.msra.mxu0 0.0
        %563 = vmatprep.subr.mxu0 0.0
        %564 = vmatpush1.msra.mxu0 0.0
        %565 = vmatprep.subr.mxu0 0.0
        %566 = vmatpush1.msra.mxu0 0.0
        %567 = vmatprep.subr.mxu0 0.0
        %568 = vmatpush1.msra.mxu0 0.0
        %569 = vmatprep.subr.mxu0 0.0
        %570 = vmatpush1.msra.mxu0 0.0
        %571 = vmatprep.subr.mxu0 0.0
        %572 = vmatpush1.msra.mxu0 0.0
        %573 = vmatprep.subr.mxu0 0.0
        %574 = vmatpush1.msra.mxu0 0.0
        %575 = vmatprep.subr.mxu0 0.0
        %576 = vmatpush1.msra.mxu0 0.0
        %577 = vmatprep.subr.mxu0 0.0
        %578 = vmatpush1.msra.mxu0 0.0
        %579 = vmatprep.subr.mxu0 0.0
        %580 = vmatpush1.msra.mxu0 0.0
        %581 = vmatprep.subr.mxu0 0.0
        %582 = vmatpush1.msra.mxu0 0.0
        %583 = vmatprep.subr.mxu0 0.0
        %584 = vmatpush1.msra.mxu0 0.0
        %585 = vmatprep.subr.mxu0 0.0
        %586 = vmatpush1.msra.mxu0 0.0
        %587 = vmatprep.subr.mxu0 0.0
        %588 = vmatpush1.msra.mxu0 0.0
        %589 = vmatprep.mubr.f32.mxu0 0.0
        %590 = vmatmul.mubr.f32.gmra.mrb[0].mxu0 %v489
        %v591 = vpop.f32.mrb[0].mxu0
        %v592 = vadd.f32 %v440, %v591
        %v593 = vpop.f32.mrb[0].mxu0
        %v594 = vadd.f32 %v440, %v593
        %595 = vmatprep.mubr.f32.mxu0 0.0
        %596 = vmatmul.mubr.f32.gmra.mrb[0].mxu0 %v492
        %v597 = vpop.f32.mrb[0].mxu0
        %v598 = vadd.f32 %v445, %v597
        %v599 = vpop.f32.mrb[0].mxu0
        %v600 = vadd.f32 %v445, %v599
        %601 = vmatprep.mubr.f32.mxu0 0.0
        %602 = vmatmul.mubr.f32.gmra.mrb[0].mxu0 %v495
        %v603 = vpop.f32.mrb[0].mxu0
        %v604 = vadd.f32 %v450, %v603
        %v605 = vpop.f32.mrb[0].mxu0
        %v606 = vadd.f32 %v450, %v605
        %607 = vmatprep.mubr.f32.mxu0 0.0
        %608 = vmatmul.mubr.f32.gmra.mrb[0].mxu0 %v498
        %v609 = vpop.f32.mrb[0].mxu0
        %v610 = vadd.f32 %v455, %v609
        %v611 = vpop.f32.mrb[0].mxu0
        %v612 = vadd.f32 %v455, %v611
        %613 = vmatprep.mubr.f32.mxu0 0.0
        %614 = vmatmul.mubr.f32.gmra.mrb[0].mxu0 %v501
        %v615 = vpop.f32.mrb[0].mxu0
        %v616 = vadd.f32 %v460, %v615
        %v617 = vpop.f32.mrb[0].mxu0
        %v618 = vadd.f32 %v460, %v617
        %619 = vmatprep.mubr.f32.mxu0 0.0
        %620 = vmatmul.mubr.f32.gmra.mrb[0].mxu0 %v504
        %v621 = vpop.f32.mrb[0].mxu0
        %v622 = vadd.f32 %v465, %v621
        %v623 = vpop.f32.mrb[0].mxu0
        %v624 = vadd.f32 %v465, %v623
        %625 = vmatprep.mubr.f32.mxu0 0.0
        %626 = vmatmul.mubr.f32.gmra.mrb[0].mxu0 %v507
        %v627 = vpop.f32.mrb[0].mxu0
        %v628 = vadd.f32 %v470, %v627
        %v629 = vpop.f32.mrb[0].mxu0
        %v630 = vadd.f32 %v470, %v629
        %631 = vmatprep.mubr.f32.mxu0 0.0
        %632 = vmatmul.mubr.f32.gmra.mrb[0].mxu0 %v510
        %v633 = vpop.f32.mrb[0].mxu0
        %v634 = vadd.f32 %v475, %v633
        %v635 = vpop.f32.mrb[0].mxu0
        %v636 = vadd.f32 %v475, %v635
        %637 = vmatprep.mubr.f32.mxu0 0.0
        %638 = vmatmul.mubr.f32.gmra.mrb[0].mxu0 %v513
        %v639 = vpop.f32.mrb[0].mxu0
        %v640 = vadd.f32 %v480, %v639
        %v641 = vpop.f32.mrb[0].mxu0
        %v642 = vadd.f32 %v480, %v641
        %643 = vmatprep.mubr.f32.mxu0 0.0
        %644 = vmatmul.mubr.f32.gmra.mrb[0].mxu0 %v516
        %v645 = vpop.f32.mrb[0].mxu0
        %v646 = vadd.f32 %v485, %v645
        %v647 = vpop.f32.mrb[0].mxu0
        %v648 = vadd.f32 %v485, %v647
        %649 = vdwg.mxu0
        %vm650 = vcmp.gt.f32.partialorder %v592, 0.0
        %vm651 = vcmp.gt.f32.partialorder %v594, 0.0
        %vm652 = vcmp.gt.f32.partialorder %v598, 0.0
        %vm653 = vcmp.gt.f32.partialorder %v600, 0.0
        %vm654 = vcmp.gt.f32.partialorder %v604, 0.0
        %vm655 = vcmp.gt.f32.partialorder %v606, 0.0
        %vm656 = vcmp.gt.f32.partialorder %v610, 0.0
        %vm657 = vcmp.gt.f32.partialorder %v612, 0.0
        %vm658 = vcmp.gt.f32.partialorder %v616, 0.0
        %vm659 = vcmp.gt.f32.partialorder %v618, 0.0
        %vm660 = vcmp.gt.f32.partialorder %v622, 0.0
        %vm661 = vcmp.gt.f32.partialorder %v624, 0.0
        %vm662 = vcmp.gt.f32.partialorder %v628, 0.0
        %vm663 = vcmp.gt.f32.partialorder %v630, 0.0
        %vm664 = vcmp.gt.f32.partialorder %v634, 0.0
        %vm665 = vcmp.gt.f32.partialorder %v636, 0.0
        %vm666 = vcmp.gt.f32.partialorder %v640, 0.0
        %vm667 = vcmp.gt.f32.partialorder %v642, 0.0
        %vm668 = vcmp.gt.f32.partialorder %v646, 0.0
        %vm669 = vcmp.gt.f32.partialorder %v648, 0.0
        %v670 = vmul.f32 %v592, 0.01
        %v671 = vmul.f32 %v594, 0.01
        %v672 = vmul.f32 %v598, 0.01
        %v673 = vmul.f32 %v600, 0.01
        %v674 = vmul.f32 %v604, 0.01
        %v675 = vmul.f32 %v606, 0.01
        %v676 = vmul.f32 %v610, 0.01
        %v677 = vmul.f32 %v612, 0.01
        %v678 = vmul.f32 %v616, 0.01
        %v679 = vmul.f32 %v618, 0.01
        %v680 = vmul.f32 %v622, 0.01
        %v681 = vmul.f32 %v624, 0.01
        %v682 = vmul.f32 %v628, 0.01
        %v683 = vmul.f32 %v630, 0.01
        %v684 = vmul.f32 %v634, 0.01
        %v685 = vmul.f32 %v636, 0.01
        %v686 = vmul.f32 %v640, 0.01
        %v687 = vmul.f32 %v642, 0.01
        %v688 = vmul.f32 %v646, 0.01
        %v689 = vmul.f32 %v648, 0.01
        %v690 = vsel %vm650, %v592, %v670
        %v691 = vsel %vm651, %v594, %v671
        %v692 = vsel %vm652, %v598, %v672
        %v693 = vsel %vm653, %v600, %v673
        %v694 = vsel %vm654, %v604, %v674
        %v695 = vsel %vm655, %v606, %v675
        %v696 = vsel %vm656, %v610, %v676
        %v697 = vsel %vm657, %v612, %v677
        %v698 = vsel %vm658, %v616, %v678
        %v699 = vsel %vm659, %v618, %v679
        %v700 = vsel %vm660, %v622, %v680
        %v701 = vsel %vm661, %v624, %v681
        %v702 = vsel %vm662, %v628, %v682
        %v703 = vsel %vm663, %v630, %v683
        %v704 = vsel %vm664, %v634, %v684
        %v705 = vsel %vm665, %v636, %v685
        %v706 = vsel %vm666, %v640, %v686
        %v707 = vsel %vm667, %v642, %v687
        %v708 = vsel %vm668, %v646, %v688
        %v709 = vsel %vm669, %v648, %v689
        %v710 = vld [vmem:[%s2] sm:$0xff]
        %v711 = vld [vmem:[%s2 + $0x8] sm:$0xff]
        %v712 = vld [vmem:[%s2 + $0x10] sm:$0xff]
        %v713 = vld [vmem:[%s2 + $0x18] sm:$0xff]
        %v714 = vld [vmem:[%s2 + $0x20] sm:$0xff]
        %v715 = vld [vmem:[%s2 + $0x28] sm:$0xff]
        %v716 = vld [vmem:[%s2 + $0x30] sm:$0xff]
        %v717 = vld [vmem:[%s2 + $0x38] sm:$0xff]
        %v718 = vld [vmem:[%s2 + $0x40] sm:$0xff]
        %v719 = vld [vmem:[%s2 + $0x48] sm:$0xff]
        %v721 = vsel %vm487, %v710, 0
        %v724 = vsel %vm487, %v711, 0
        %v727 = vsel %vm487, %v712, 0
        %v730 = vsel %vm487, %v713, 0
        %v733 = vsel %vm487, %v714, 0
        %v736 = vsel %vm487, %v715, 0
        %v739 = vsel %vm487, %v716, 0
        %v742 = vsel %vm487, %v717, 0
        %v745 = vsel %vm487, %v718, 0
        %v748 = vsel %vm487, %v719, 0
        %750 = vmatprep.subr.mxu0 %v414
        %751 = vmatpush1.msra.mxu0 %v413
        %752 = vmatprep.subr.mxu0 %v523
        %753 = vmatpush1.msra.mxu0 %v520
        %754 = vmatprep.subr.mxu0 0.0
        %755 = vmatpush1.msra.mxu0 0.0
        %756 = vmatprep.subr.mxu0 0.0
        %757 = vmatpush1.msra.mxu0 0.0
        %758 = vmatprep.subr.mxu0 0.0
        %759 = vmatpush1.msra.mxu0 0.0
        %760 = vmatprep.subr.mxu0 0.0
        %761 = vmatpush1.msra.mxu0 0.0
        %762 = vmatprep.subr.mxu0 0.0
        %763 = vmatpush1.msra.mxu0 0.0
        %764 = vmatprep.subr.mxu0 0.0
        %765 = vmatpush1.msra.mxu0 0.0
        %766 = vmatprep.subr.mxu0 0.0
        %767 = vmatpush1.msra.mxu0 0.0
        %768 = vmatprep.subr.mxu0 0.0
        %769 = vmatpush1.msra.mxu0 0.0
        %770 = vmatprep.subr.mxu0 0.0
        %771 = vmatpush1.msra.mxu0 0.0
        %772 = vmatprep.subr.mxu0 0.0
        %773 = vmatpush1.msra.mxu0 0.0
        %774 = vmatprep.subr.mxu0 0.0
        %775 = vmatpush1.msra.mxu0 0.0
        %776 = vmatprep.subr.mxu0 0.0
        %777 = vmatpush1.msra.mxu0 0.0
        %778 = vmatprep.subr.mxu0 0.0
        %779 = vmatpush1.msra.mxu0 0.0
        %780 = vmatprep.subr.mxu0 0.0
        %781 = vmatpush1.msra.mxu0 0.0
        %782 = vmatprep.subr.mxu0 0.0
        %783 = vmatpush1.msra.mxu0 0.0
        %784 = vmatprep.subr.mxu0 0.0
        %785 = vmatpush1.msra.mxu0 0.0
        %786 = vmatprep.subr.mxu0 0.0
        %787 = vmatpush1.msra.mxu0 0.0
        %788 = vmatprep.subr.mxu0 0.0
        %789 = vmatpush1.msra.mxu0 0.0
        %790 = vmatprep.subr.mxu0 0.0
        %791 = vmatpush1.msra.mxu0 0.0
        %792 = vmatprep.subr.mxu0 0.0
        %793 = vmatpush1.msra.mxu0 0.0
        %794 = vmatprep.subr.mxu0 0.0
        %795 = vmatpush1.msra.mxu0 0.0
        %796 = vmatprep.subr.mxu0 0.0
        %797 = vmatpush1.msra.mxu0 0.0
        %798 = vmatprep.subr.mxu0 0.0
        %799 = vmatpush1.msra.mxu0 0.0
        %800 = vmatprep.subr.mxu0 0.0
        %801 = vmatpush1.msra.mxu0 0.0
        %802 = vmatprep.subr.mxu0 0.0
        %803 = vmatpush1.msra.mxu0 0.0
        %804 = vmatprep.subr.mxu0 0.0
        %805 = vmatpush1.msra.mxu0 0.0
        %806 = vmatprep.subr.mxu0 0.0
        %807 = vmatpush1.msra.mxu0 0.0
        %808 = vmatprep.subr.mxu0 0.0
        %809 = vmatpush1.msra.mxu0 0.0
        %810 = vmatprep.subr.mxu0 0.0
        %811 = vmatpush1.msra.mxu0 0.0
        %812 = vmatprep.subr.mxu0 0.0
        %813 = vmatpush1.msra.mxu0 0.0
        %814 = vmatprep.mubr.f32.mxu0 0.0
        %815 = vmatmul.mubr.f32.gmra.mrb[0].mxu0 %v721
        %v816 = vpop.f32.mrb[0].mxu0
        %v817 = vadd.f32 %v440, %v816
        %v818 = vpop.f32.mrb[0].mxu0
        %v819 = vadd.f32 %v440, %v818
        %820 = vmatprep.mubr.f32.mxu0 0.0
        %821 = vmatmul.mubr.f32.gmra.mrb[0].mxu0 %v724
        %v822 = vpop.f32.mrb[0].mxu0
        %v823 = vadd.f32 %v445, %v822
        %v824 = vpop.f32.mrb[0].mxu0
        %v825 = vadd.f32 %v445, %v824
        %826 = vmatprep.mubr.f32.mxu0 0.0
        %827 = vmatmul.mubr.f32.gmra.mrb[0].mxu0 %v727
        %v828 = vpop.f32.mrb[0].mxu0
        %v829 = vadd.f32 %v450, %v828
        %v830 = vpop.f32.mrb[0].mxu0
        %v831 = vadd.f32 %v450, %v830
        %832 = vmatprep.mubr.f32.mxu0 0.0
        %833 = vmatmul.mubr.f32.gmra.mrb[0].mxu0 %v730
        %v834 = vpop.f32.mrb[0].mxu0
        %v835 = vadd.f32 %v455, %v834
        %v836 = vpop.f32.mrb[0].mxu0
        %v837 = vadd.f32 %v455, %v836
        %838 = vmatprep.mubr.f32.mxu0 0.0
        %839 = vmatmul.mubr.f32.gmra.mrb[0].mxu0 %v733
        %v840 = vpop.f32.mrb[0].mxu0
        %v841 = vadd.f32 %v460, %v840
        %v842 = vpop.f32.mrb[0].mxu0
        %v843 = vadd.f32 %v460, %v842
        %844 = vmatprep.mubr.f32.mxu0 0.0
        %845 = vmatmul.mubr.f32.gmra.mrb[0].mxu0 %v736
        %v846 = vpop.f32.mrb[0].mxu0
        %v847 = vadd.f32 %v465, %v846
        %v848 = vpop.f32.mrb[0].mxu0
        %v849 = vadd.f32 %v465, %v848
        %850 = vmatprep.mubr.f32.mxu0 0.0
        %851 = vmatmul.mubr.f32.gmra.mrb[0].mxu0 %v739
        %v852 = vpop.f32.mrb[0].mxu0
        %v853 = vadd.f32 %v470, %v852
        %v854 = vpop.f32.mrb[0].mxu0
        %v855 = vadd.f32 %v470, %v854
        %856 = vmatprep.mubr.f32.mxu0 0.0
        %857 = vmatmul.mubr.f32.gmra.mrb[0].mxu0 %v742
        %v858 = vpop.f32.mrb[0].mxu0
        %v859 = vadd.f32 %v475, %v858
        %v860 = vpop.f32.mrb[0].mxu0
        %v861 = vadd.f32 %v475, %v860
        %862 = vmatprep.mubr.f32.mxu0 0.0
        %863 = vmatmul.mubr.f32.gmra.mrb[0].mxu0 %v745
        %v864 = vpop.f32.mrb[0].mxu0
        %v865 = vadd.f32 %v480, %v864
        %v866 = vpop.f32.mrb[0].mxu0
        %v867 = vadd.f32 %v480, %v866
        %868 = vmatprep.mubr.f32.mxu0 0.0
        %869 = vmatmul.mubr.f32.gmra.mrb[0].mxu0 %v748
        %v870 = vpop.f32.mrb[0].mxu0
        %v871 = vadd.f32 %v485, %v870
        %v872 = vpop.f32.mrb[0].mxu0
        %v873 = vadd.f32 %v485, %v872
        %874 = vdwg.mxu0
        %vm875 = vcmp.gt.f32.partialorder %v817, 0.0
        %vm876 = vcmp.gt.f32.partialorder %v819, 0.0
        %vm877 = vcmp.gt.f32.partialorder %v823, 0.0
        %vm878 = vcmp.gt.f32.partialorder %v825, 0.0
        %vm879 = vcmp.gt.f32.partialorder %v829, 0.0
        %vm880 = vcmp.gt.f32.partialorder %v831, 0.0
        %vm881 = vcmp.gt.f32.partialorder %v835, 0.0
        %vm882 = vcmp.gt.f32.partialorder %v837, 0.0
        %vm883 = vcmp.gt.f32.partialorder %v841, 0.0
        %vm884 = vcmp.gt.f32.partialorder %v843, 0.0
        %vm885 = vcmp.gt.f32.partialorder %v847, 0.0
        %vm886 = vcmp.gt.f32.partialorder %v849, 0.0
        %vm887 = vcmp.gt.f32.partialorder %v853, 0.0
        %vm888 = vcmp.gt.f32.partialorder %v855, 0.0
        %vm889 = vcmp.gt.f32.partialorder %v859, 0.0
        %vm890 = vcmp.gt.f32.partialorder %v861, 0.0
        %vm891 = vcmp.gt.f32.partialorder %v865, 0.0
        %vm892 = vcmp.gt.f32.partialorder %v867, 0.0
        %vm893 = vcmp.gt.f32.partialorder %v871, 0.0
        %vm894 = vcmp.gt.f32.partialorder %v873, 0.0
        %v895 = vmul.f32 %v817, 0.01
        %v896 = vmul.f32 %v819, 0.01
        %v897 = vmul.f32 %v823, 0.01
        %v898 = vmul.f32 %v825, 0.01
        %v899 = vmul.f32 %v829, 0.01
        %v900 = vmul.f32 %v831, 0.01
        %v901 = vmul.f32 %v835, 0.01
        %v902 = vmul.f32 %v837, 0.01
        %v903 = vmul.f32 %v841, 0.01
        %v904 = vmul.f32 %v843, 0.01
        %v905 = vmul.f32 %v847, 0.01
        %v906 = vmul.f32 %v849, 0.01
        %v907 = vmul.f32 %v853, 0.01
        %v908 = vmul.f32 %v855, 0.01
        %v909 = vmul.f32 %v859, 0.01
        %v910 = vmul.f32 %v861, 0.01
        %v911 = vmul.f32 %v865, 0.01
        %v912 = vmul.f32 %v867, 0.01
        %v913 = vmul.f32 %v871, 0.01
        %v914 = vmul.f32 %v873, 0.01
        %v915 = vsel %vm875, %v817, %v895
        %v916 = vsel %vm876, %v819, %v896
        %v917 = vsel %vm877, %v823, %v897
        %v918 = vsel %vm878, %v825, %v898
        %v919 = vsel %vm879, %v829, %v899
        %v920 = vsel %vm880, %v831, %v900
        %v921 = vsel %vm881, %v835, %v901
        %v922 = vsel %vm882, %v837, %v902
        %v923 = vsel %vm883, %v841, %v903
        %v924 = vsel %vm884, %v843, %v904
        %v925 = vsel %vm885, %v847, %v905
        %v926 = vsel %vm886, %v849, %v906
        %v927 = vsel %vm887, %v853, %v907
        %v928 = vsel %vm888, %v855, %v908
        %v929 = vsel %vm889, %v859, %v909
        %v930 = vsel %vm890, %v861, %v910
        %v931 = vsel %vm891, %v865, %v911
        %v932 = vsel %vm892, %v867, %v912
        %v933 = vsel %vm893, %v871, %v913
        %v934 = vsel %vm894, %v873, %v914
        %v935 = vld [vmem:[%s4] sm:$0xff]
        %v936 = vld [vmem:[%s4 + $0x8] sm:$0xff]
        %v937 = vld [vmem:[%s4 + $0x10] sm:$0xff]
        %v938 = vld [vmem:[%s4 + $0x18] sm:$0xff]
        %v939 = vld [vmem:[%s4 + $0x20] sm:$0xff]
        %v940 = vld [vmem:[%s4 + $0x28] sm:$0xff]
        %v941 = vld [vmem:[%s4 + $0x30] sm:$0xff]
        %v942 = vld [vmem:[%s4 + $0x38] sm:$0xff]
        %v943 = vld [vmem:[%s4 + $0x40] sm:$0xff]
        %v944 = vld [vmem:[%s4 + $0x48] sm:$0xff]
        %v945 = vld [vmem:[%s5] sm:$0xff]
        %v946 = vld [vmem:[%s5 + $0x8] sm:$0xff]
        %v947 = vld [vmem:[%s5 + $0x10] sm:$0xff]
        %v948 = vld [vmem:[%s5 + $0x18] sm:$0xff]
        %v949 = vld [vmem:[%s5 + $0x20] sm:$0xff]
        %v950 = vld [vmem:[%s5 + $0x28] sm:$0xff]
        %v951 = vld [vmem:[%s5 + $0x30] sm:$0xff]
        %v952 = vld [vmem:[%s5 + $0x38] sm:$0xff]
        %v953 = vld [vmem:[%s5 + $0x40] sm:$0xff]
        %v954 = vld [vmem:[%s5 + $0x48] sm:$0xff]
        %956 = vset.pattern.permute.xlu0 0
        %957 = vperm.xlu0 %956, %v945
        %v958 = vpop.permute.xlu0 %957
        %961 = vset.pattern.permute.xlu0 0
        %962 = vperm.xlu0 %961, %v946
        %v963 = vpop.permute.xlu0 %962
        %966 = vset.pattern.permute.xlu0 0
        %967 = vperm.xlu0 %966, %v947
        %v968 = vpop.permute.xlu0 %967
        %971 = vset.pattern.permute.xlu0 0
        %972 = vperm.xlu0 %971, %v948
        %v973 = vpop.permute.xlu0 %972
        %976 = vset.pattern.permute.xlu0 0
        %977 = vperm.xlu0 %976, %v949
        %v978 = vpop.permute.xlu0 %977
        %981 = vset.pattern.permute.xlu0 0
        %982 = vperm.xlu0 %981, %v950
        %v983 = vpop.permute.xlu0 %982
        %986 = vset.pattern.permute.xlu0 0
        %987 = vperm.xlu0 %986, %v951
        %v988 = vpop.permute.xlu0 %987
        %991 = vset.pattern.permute.xlu0 0
        %992 = vperm.xlu0 %991, %v952
        %v993 = vpop.permute.xlu0 %992
        %996 = vset.pattern.permute.xlu0 0
        %997 = vperm.xlu0 %996, %v953
        %v998 = vpop.permute.xlu0 %997
        %1001 = vset.pattern.permute.xlu0 0
        %1002 = vperm.xlu0 %1001, %v954
        %v1003 = vpop.permute.xlu0 %1002
        %vm1005 = vcmask 654336
        %v1007 = vsel %vm1005, %v935, 0
        %v1010 = vsel %vm1005, %v936, 0
        %v1013 = vsel %vm1005, %v937, 0
        %v1016 = vsel %vm1005, %v938, 0
        %v1019 = vsel %vm1005, %v939, 0
        %v1022 = vsel %vm1005, %v940, 0
        %v1025 = vsel %vm1005, %v941, 0
        %v1028 = vsel %vm1005, %v942, 0
        %v1031 = vsel %vm1005, %v943, 0
        %v1034 = vsel %vm1005, %v944, 0
        %1036 = vmatprep.subr.mxu0 %v691
        %1037 = vmatpush1.msra.mxu0 %v690
        %1038 = vmatprep.subr.mxu0 %v693
        %1039 = vmatpush1.msra.mxu0 %v692
        %1040 = vmatprep.subr.mxu0 %v695
        %1041 = vmatpush1.msra.mxu0 %v694
        %1042 = vmatprep.subr.mxu0 %v697
        %1043 = vmatpush1.msra.mxu0 %v696
        %1044 = vmatprep.subr.mxu0 %v699
        %1045 = vmatpush1.msra.mxu0 %v698
        %1046 = vmatprep.subr.mxu0 %v701
        %1047 = vmatpush1.msra.mxu0 %v700
        %1048 = vmatprep.subr.mxu0 %v703
        %1049 = vmatpush1.msra.mxu0 %v702
        %1050 = vmatprep.subr.mxu0 %v705
        %1051 = vmatpush1.msra.mxu0 %v704
        %1052 = vmatprep.subr.mxu0 %v707
        %1053 = vmatpush1.msra.mxu0 %v706
        %1054 = vmatprep.subr.mxu0 %v709
        %1055 = vmatpush1.msra.mxu0 %v708
        %1056 = vmatprep.subr.mxu0 0.0
        %1057 = vmatpush1.msra.mxu0 0.0
        %1058 = vmatprep.subr.mxu0 0.0
        %1059 = vmatpush1.msra.mxu0 0.0
        %1060 = vmatprep.subr.mxu0 0.0
        %1061 = vmatpush1.msra.mxu0 0.0
        %1062 = vmatprep.subr.mxu0 0.0
        %1063 = vmatpush1.msra.mxu0 0.0
        %1064 = vmatprep.subr.mxu0 0.0
        %1065 = vmatpush1.msra.mxu0 0.0
        %1066 = vmatprep.subr.mxu0 0.0
        %1067 = vmatpush1.msra.mxu0 0.0
        %1068 = vmatprep.subr.mxu0 0.0
        %1069 = vmatpush1.msra.mxu0 0.0
        %1070 = vmatprep.subr.mxu0 0.0
        %1071 = vmatpush1.msra.mxu0 0.0
        %1072 = vmatprep.subr.mxu0 0.0
        %1073 = vmatpush1.msra.mxu0 0.0
        %1074 = vmatprep.subr.mxu0 0.0
        %1075 = vmatpush1.msra.mxu0 0.0
        %1076 = vmatprep.subr.mxu0 0.0
        %1077 = vmatpush1.msra.mxu0 0.0
        %1078 = vmatprep.subr.mxu0 0.0
        %1079 = vmatpush1.msra.mxu0 0.0
        %1080 = vmatprep.subr.mxu0 0.0
        %1081 = vmatpush1.msra.mxu0 0.0
        %1082 = vmatprep.subr.mxu0 0.0
        %1083 = vmatpush1.msra.mxu0 0.0
        %1084 = vmatprep.subr.mxu0 0.0
        %1085 = vmatpush1.msra.mxu0 0.0
        %1086 = vmatprep.subr.mxu0 0.0
        %1087 = vmatpush1.msra.mxu0 0.0
        %1088 = vmatprep.subr.mxu0 0.0
        %1089 = vmatpush1.msra.mxu0 0.0
        %1090 = vmatprep.subr.mxu0 0.0
        %1091 = vmatpush1.msra.mxu0 0.0
        %1092 = vmatprep.subr.mxu0 0.0
        %1093 = vmatpush1.msra.mxu0 0.0
        %1094 = vmatprep.subr.mxu0 0.0
        %1095 = vmatpush1.msra.mxu0 0.0
        %1096 = vmatprep.subr.mxu0 0.0
        %1097 = vmatpush1.msra.mxu0 0.0
        %1098 = vmatprep.subr.mxu0 0.0
        %1099 = vmatpush1.msra.mxu0 0.0
        %1100 = vmatprep.mubr.f32.mxu0 0.0
        %1101 = vmatmul.mubr.f32.gmra.mrb[0].mxu0 %v1007
        %v1102 = vpop.f32.mrb[0].mxu0
        %v1103 = vadd.f32 %v958, %v1102
        %v1104 = vpop.f32.mrb[0].mxu0
        %v1105 = vadd.f32 %v958, %v1104
        %1106 = vmatprep.mubr.f32.mxu0 0.0
        %1107 = vmatmul.mubr.f32.gmra.mrb[0].mxu0 %v1010
        %v1108 = vpop.f32.mrb[0].mxu0
        %v1109 = vadd.f32 %v963, %v1108
        %v1110 = vpop.f32.mrb[0].mxu0
        %v1111 = vadd.f32 %v963, %v1110
        %1112 = vmatprep.mubr.f32.mxu0 0.0
        %1113 = vmatmul.mubr.f32.gmra.mrb[0].mxu0 %v1013
        %v1114 = vpop.f32.mrb[0].mxu0
        %v1115 = vadd.f32 %v968, %v1114
        %v1116 = vpop.f32.mrb[0].mxu0
        %v1117 = vadd.f32 %v968, %v1116
        %1118 = vmatprep.mubr.f32.mxu0 0.0
        %1119 = vmatmul.mubr.f32.gmra.mrb[0].mxu0 %v1016
        %v1120 = vpop.f32.mrb[0].mxu0
        %v1121 = vadd.f32 %v973, %v1120
        %v1122 = vpop.f32.mrb[0].mxu0
        %v1123 = vadd.f32 %v973, %v1122
        %1124 = vmatprep.mubr.f32.mxu0 0.0
        %1125 = vmatmul.mubr.f32.gmra.mrb[0].mxu0 %v1019
        %v1126 = vpop.f32.mrb[0].mxu0
        %v1127 = vadd.f32 %v978, %v1126
        %v1128 = vpop.f32.mrb[0].mxu0
        %v1129 = vadd.f32 %v978, %v1128
        %1130 = vmatprep.mubr.f32.mxu0 0.0
        %1131 = vmatmul.mubr.f32.gmra.mrb[0].mxu0 %v1022
        %v1132 = vpop.f32.mrb[0].mxu0
        %v1133 = vadd.f32 %v983, %v1132
        %v1134 = vpop.f32.mrb[0].mxu0
        %v1135 = vadd.f32 %v983, %v1134
        %1136 = vmatprep.mubr.f32.mxu0 0.0
        %1137 = vmatmul.mubr.f32.gmra.mrb[0].mxu0 %v1025
        %v1138 = vpop.f32.mrb[0].mxu0
        %v1139 = vadd.f32 %v988, %v1138
        %v1140 = vpop.f32.mrb[0].mxu0
        %v1141 = vadd.f32 %v988, %v1140
        %1142 = vmatprep.mubr.f32.mxu0 0.0
        %1143 = vmatmul.mubr.f32.gmra.mrb[0].mxu0 %v1028
        %v1144 = vpop.f32.mrb[0].mxu0
        %v1145 = vadd.f32 %v993, %v1144
        %v1146 = vpop.f32.mrb[0].mxu0
        %v1147 = vadd.f32 %v993, %v1146
        %1148 = vmatprep.mubr.f32.mxu0 0.0
        %1149 = vmatmul.mubr.f32.gmra.mrb[0].mxu0 %v1031
        %v1150 = vpop.f32.mrb[0].mxu0
        %v1151 = vadd.f32 %v998, %v1150
        %v1152 = vpop.f32.mrb[0].mxu0
        %v1153 = vadd.f32 %v998, %v1152
        %1154 = vmatprep.mubr.f32.mxu0 0.0
        %1155 = vmatmul.mubr.f32.gmra.mrb[0].mxu0 %v1034
        %v1156 = vpop.f32.mrb[0].mxu0
        %v1157 = vadd.f32 %v1003, %v1156
        %v1158 = vpop.f32.mrb[0].mxu0
        %v1159 = vadd.f32 %v1003, %v1158
        %1160 = vdwg.mxu0
        %1161 = vmatprep.subr.mxu0 %v916
        %1162 = vmatpush1.msra.mxu0 %v915
        %1163 = vmatprep.subr.mxu0 %v918
        %1164 = vmatpush1.msra.mxu0 %v917
        %1165 = vmatprep.subr.mxu0 %v920
        %1166 = vmatpush1.msra.mxu0 %v919
        %1167 = vmatprep.subr.mxu0 %v922
        %1168 = vmatpush1.msra.mxu0 %v921
        %1169 = vmatprep.subr.mxu0 %v924
        %1170 = vmatpush1.msra.mxu0 %v923
        %1171 = vmatprep.subr.mxu0 %v926
        %1172 = vmatpush1.msra.mxu0 %v925
        %1173 = vmatprep.subr.mxu0 %v928
        %1174 = vmatpush1.msra.mxu0 %v927
        %1175 = vmatprep.subr.mxu0 %v930
        %1176 = vmatpush1.msra.mxu0 %v929
        %1177 = vmatprep.subr.mxu0 %v932
        %1178 = vmatpush1.msra.mxu0 %v931
        %1179 = vmatprep.subr.mxu0 %v934
        %1180 = vmatpush1.msra.mxu0 %v933
        %1181 = vmatprep.subr.mxu0 0.0
        %1182 = vmatpush1.msra.mxu0 0.0
        %1183 = vmatprep.subr.mxu0 0.0
        %1184 = vmatpush1.msra.mxu0 0.0
        %1185 = vmatprep.subr.mxu0 0.0
        %1186 = vmatpush1.msra.mxu0 0.0
        %1187 = vmatprep.subr.mxu0 0.0
        %1188 = vmatpush1.msra.mxu0 0.0
        %1189 = vmatprep.subr.mxu0 0.0
        %1190 = vmatpush1.msra.mxu0 0.0
        %1191 = vmatprep.subr.mxu0 0.0
        %1192 = vmatpush1.msra.mxu0 0.0
        %1193 = vmatprep.subr.mxu0 0.0
        %1194 = vmatpush1.msra.mxu0 0.0
        %1195 = vmatprep.subr.mxu0 0.0
        %1196 = vmatpush1.msra.mxu0 0.0
        %1197 = vmatprep.subr.mxu0 0.0
        %1198 = vmatpush1.msra.mxu0 0.0
        %1199 = vmatprep.subr.mxu0 0.0
        %1200 = vmatpush1.msra.mxu0 0.0
        %1201 = vmatprep.subr.mxu0 0.0
        %1202 = vmatpush1.msra.mxu0 0.0
        %1203 = vmatprep.subr.mxu0 0.0
        %1204 = vmatpush1.msra.mxu0 0.0
        %1205 = vmatprep.subr.mxu0 0.0
        %1206 = vmatpush1.msra.mxu0 0.0
        %1207 = vmatprep.subr.mxu0 0.0
        %1208 = vmatpush1.msra.mxu0 0.0
        %1209 = vmatprep.subr.mxu0 0.0
        %1210 = vmatpush1.msra.mxu0 0.0
        %1211 = vmatprep.subr.mxu0 0.0
        %1212 = vmatpush1.msra.mxu0 0.0
        %1213 = vmatprep.subr.mxu0 0.0
        %1214 = vmatpush1.msra.mxu0 0.0
        %1215 = vmatprep.subr.mxu0 0.0
        %1216 = vmatpush1.msra.mxu0 0.0
        %1217 = vmatprep.subr.mxu0 0.0
        %1218 = vmatpush1.msra.mxu0 0.0
        %1219 = vmatprep.subr.mxu0 0.0
        %1220 = vmatpush1.msra.mxu0 0.0
        %1221 = vmatprep.subr.mxu0 0.0
        %1222 = vmatpush1.msra.mxu0 0.0
        %1223 = vmatprep.subr.mxu0 0.0
        %1224 = vmatpush1.msra.mxu0 0.0
        %1225 = vmatprep.mubr.f32.mxu0 0.0
        %1226 = vmatmul.mubr.f32.gmra.mrb[0].mxu0 %v1007
        %v1227 = vpop.f32.mrb[0].mxu0
        %v1228 = vadd.f32 %v958, %v1227
        %v1229 = vpop.f32.mrb[0].mxu0
        %v1230 = vadd.f32 %v958, %v1229
        %1231 = vmatprep.mubr.f32.mxu0 0.0
        %1232 = vmatmul.mubr.f32.gmra.mrb[0].mxu0 %v1010
        %v1233 = vpop.f32.mrb[0].mxu0
        %v1234 = vadd.f32 %v963, %v1233
        %v1235 = vpop.f32.mrb[0].mxu0
        %v1236 = vadd.f32 %v963, %v1235
        %1237 = vmatprep.mubr.f32.mxu0 0.0
        %1238 = vmatmul.mubr.f32.gmra.mrb[0].mxu0 %v1013
        %v1239 = vpop.f32.mrb[0].mxu0
        %v1240 = vadd.f32 %v968, %v1239
        %v1241 = vpop.f32.mrb[0].mxu0
        %v1242 = vadd.f32 %v968, %v1241
        %1243 = vmatprep.mubr.f32.mxu0 0.0
        %1244 = vmatmul.mubr.f32.gmra.mrb[0].mxu0 %v1016
        %v1245 = vpop.f32.mrb[0].mxu0
        %v1246 = vadd.f32 %v973, %v1245
        %v1247 = vpop.f32.mrb[0].mxu0
        %v1248 = vadd.f32 %v973, %v1247
        %1249 = vmatprep.mubr.f32.mxu0 0.0
        %1250 = vmatmul.mubr.f32.gmra.mrb[0].mxu0 %v1019
        %v1251 = vpop.f32.mrb[0].mxu0
        %v1252 = vadd.f32 %v978, %v1251
        %v1253 = vpop.f32.mrb[0].mxu0
        %v1254 = vadd.f32 %v978, %v1253
        %1255 = vmatprep.mubr.f32.mxu0 0.0
        %1256 = vmatmul.mubr.f32.gmra.mrb[0].mxu0 %v1022
        %v1257 = vpop.f32.mrb[0].mxu0
        %v1258 = vadd.f32 %v983, %v1257
        %v1259 = vpop.f32.mrb[0].mxu0
        %v1260 = vadd.f32 %v983, %v1259
        %1261 = vmatprep.mubr.f32.mxu0 0.0
        %1262 = vmatmul.mubr.f32.gmra.mrb[0].mxu0 %v1025
        %v1263 = vpop.f32.mrb[0].mxu0
        %v1264 = vadd.f32 %v988, %v1263
        %v1265 = vpop.f32.mrb[0].mxu0
        %v1266 = vadd.f32 %v988, %v1265
        %1267 = vmatprep.mubr.f32.mxu0 0.0
        %1268 = vmatmul.mubr.f32.gmra.mrb[0].mxu0 %v1028
        %v1269 = vpop.f32.mrb[0].mxu0
        %v1270 = vadd.f32 %v993, %v1269
        %v1271 = vpop.f32.mrb[0].mxu0
        %v1272 = vadd.f32 %v993, %v1271
        %1273 = vmatprep.mubr.f32.mxu0 0.0
        %1274 = vmatmul.mubr.f32.gmra.mrb[0].mxu0 %v1031
        %v1275 = vpop.f32.mrb[0].mxu0
        %v1276 = vadd.f32 %v998, %v1275
        %v1277 = vpop.f32.mrb[0].mxu0
        %v1278 = vadd.f32 %v998, %v1277
        %1279 = vmatprep.mubr.f32.mxu0 0.0
        %1280 = vmatmul.mubr.f32.gmra.mrb[0].mxu0 %v1034
        %v1281 = vpop.f32.mrb[0].mxu0
        %v1282 = vadd.f32 %v1003, %v1281
        %v1283 = vpop.f32.mrb[0].mxu0
        %v1284 = vadd.f32 %v1003, %v1283
        %1285 = vdwg.mxu0
        %vm1286 = vcmp.gt.f32.partialorder %v1103, 0.0
        %vm1287 = vcmp.gt.f32.partialorder %v1105, 0.0
        %vm1288 = vcmp.gt.f32.partialorder %v1228, 0.0
        %vm1289 = vcmp.gt.f32.partialorder %v1230, 0.0
        %vm1290 = vcmp.gt.f32.partialorder %v1109, 0.0
        %vm1291 = vcmp.gt.f32.partialorder %v1111, 0.0
        %vm1292 = vcmp.gt.f32.partialorder %v1234, 0.0
        %vm1293 = vcmp.gt.f32.partialorder %v1236, 0.0
        %vm1294 = vcmp.gt.f32.partialorder %v1115, 0.0
        %vm1295 = vcmp.gt.f32.partialorder %v1117, 0.0
        %vm1296 = vcmp.gt.f32.partialorder %v1240, 0.0
        %vm1297 = vcmp.gt.f32.partialorder %v1242, 0.0
        %vm1298 = vcmp.gt.f32.partialorder %v1121, 0.0
        %vm1299 = vcmp.gt.f32.partialorder %v1123, 0.0
        %vm1300 = vcmp.gt.f32.partialorder %v1246, 0.0
        %vm1301 = vcmp.gt.f32.partialorder %v1248, 0.0
        %vm1302 = vcmp.gt.f32.partialorder %v1127, 0.0
        %vm1303 = vcmp.gt.f32.partialorder %v1129, 0.0
        %vm1304 = vcmp.gt.f32.partialorder %v1252, 0.0
        %vm1305 = vcmp.gt.f32.partialorder %v1254, 0.0
        %vm1306 = vcmp.gt.f32.partialorder %v1133, 0.0
        %vm1307 = vcmp.gt.f32.partialorder %v1135, 0.0
        %vm1308 = vcmp.gt.f32.partialorder %v1258, 0.0
        %vm1309 = vcmp.gt.f32.partialorder %v1260, 0.0
        %vm1310 = vcmp.gt.f32.partialorder %v1139, 0.0
        %vm1311 = vcmp.gt.f32.partialorder %v1141, 0.0
        %vm1312 = vcmp.gt.f32.partialorder %v1264, 0.0
        %vm1313 = vcmp.gt.f32.partialorder %v1266, 0.0
        %vm1314 = vcmp.gt.f32.partialorder %v1145, 0.0
        %vm1315 = vcmp.gt.f32.partialorder %v1147, 0.0
        %vm1316 = vcmp.gt.f32.partialorder %v1270, 0.0
        %vm1317 = vcmp.gt.f32.partialorder %v1272, 0.0
        %vm1318 = vcmp.gt.f32.partialorder %v1151, 0.0
        %vm1319 = vcmp.gt.f32.partialorder %v1153, 0.0
        %vm1320 = vcmp.gt.f32.partialorder %v1276, 0.0
        %vm1321 = vcmp.gt.f32.partialorder %v1278, 0.0
        %vm1322 = vcmp.gt.f32.partialorder %v1157, 0.0
        %vm1323 = vcmp.gt.f32.partialorder %v1159, 0.0
        %vm1324 = vcmp.gt.f32.partialorder %v1282, 0.0
        %vm1325 = vcmp.gt.f32.partialorder %v1284, 0.0
        %v1326 = vmul.f32 %v1103, 0.01
        %v1327 = vmul.f32 %v1105, 0.01
        %v1328 = vmul.f32 %v1228, 0.01
        %v1329 = vmul.f32 %v1230, 0.01
        %v1330 = vmul.f32 %v1109, 0.01
        %v1331 = vmul.f32 %v1111, 0.01
        %v1332 = vmul.f32 %v1234, 0.01
        %v1333 = vmul.f32 %v1236, 0.01
        %v1334 = vmul.f32 %v1115, 0.01
        %v1335 = vmul.f32 %v1117, 0.01
        %v1336 = vmul.f32 %v1240, 0.01
        %v1337 = vmul.f32 %v1242, 0.01
        %v1338 = vmul.f32 %v1121, 0.01
        %v1339 = vmul.f32 %v1123, 0.01
        %v1340 = vmul.f32 %v1246, 0.01
        %v1341 = vmul.f32 %v1248, 0.01
        %v1342 = vmul.f32 %v1127, 0.01
        %v1343 = vmul.f32 %v1129, 0.01
        %v1344 = vmul.f32 %v1252, 0.01
        %v1345 = vmul.f32 %v1254, 0.01
        %v1346 = vmul.f32 %v1133, 0.01
        %v1347 = vmul.f32 %v1135, 0.01
        %v1348 = vmul.f32 %v1258, 0.01
        %v1349 = vmul.f32 %v1260, 0.01
        %v1350 = vmul.f32 %v1139, 0.01
        %v1351 = vmul.f32 %v1141, 0.01
        %v1352 = vmul.f32 %v1264, 0.01
        %v1353 = vmul.f32 %v1266, 0.01
        %v1354 = vmul.f32 %v1145, 0.01
        %v1355 = vmul.f32 %v1147, 0.01
        %v1356 = vmul.f32 %v1270, 0.01
        %v1357 = vmul.f32 %v1272, 0.01
        %v1358 = vmul.f32 %v1151, 0.01
        %v1359 = vmul.f32 %v1153, 0.01
        %v1360 = vmul.f32 %v1276, 0.01
        %v1361 = vmul.f32 %v1278, 0.01
        %v1362 = vmul.f32 %v1157, 0.01
        %v1363 = vmul.f32 %v1159, 0.01
        %v1364 = vmul.f32 %v1282, 0.01
        %v1365 = vmul.f32 %v1284, 0.01
        %v1366 = vsel %vm1286, %v1103, %v1326
        %v1367 = vsel %vm1287, %v1105, %v1327
        %v1368 = vsel %vm1288, %v1228, %v1328
        %v1369 = vsel %vm1289, %v1230, %v1329
        %v1370 = vsel %vm1290, %v1109, %v1330
        %v1371 = vsel %vm1291, %v1111, %v1331
        %v1372 = vsel %vm1292, %v1234, %v1332
        %v1373 = vsel %vm1293, %v1236, %v1333
        %v1374 = vsel %vm1294, %v1115, %v1334
        %v1375 = vsel %vm1295, %v1117, %v1335
        %v1376 = vsel %vm1296, %v1240, %v1336
        %v1377 = vsel %vm1297, %v1242, %v1337
        %v1378 = vsel %vm1298, %v1121, %v1338
        %v1379 = vsel %vm1299, %v1123, %v1339
        %v1380 = vsel %vm1300, %v1246, %v1340
        %v1381 = vsel %vm1301, %v1248, %v1341
        %v1382 = vsel %vm1302, %v1127, %v1342
        %v1383 = vsel %vm1303, %v1129, %v1343
        %v1384 = vsel %vm1304, %v1252, %v1344
        %v1385 = vsel %vm1305, %v1254, %v1345
        %v1386 = vsel %vm1306, %v1133, %v1346
        %v1387 = vsel %vm1307, %v1135, %v1347
        %v1388 = vsel %vm1308, %v1258, %v1348
        %v1389 = vsel %vm1309, %v1260, %v1349
        %v1390 = vsel %vm1310, %v1139, %v1350
        %v1391 = vsel %vm1311, %v1141, %v1351
        %v1392 = vsel %vm1312, %v1264, %v1352
        %v1393 = vsel %vm1313, %v1266, %v1353
        %v1394 = vsel %vm1314, %v1145, %v1354
        %v1395 = vsel %vm1315, %v1147, %v1355
        %v1396 = vsel %vm1316, %v1270, %v1356
        %v1397 = vsel %vm1317, %v1272, %v1357
        %v1398 = vsel %vm1318, %v1151, %v1358
        %v1399 = vsel %vm1319, %v1153, %v1359
        %v1400 = vsel %vm1320, %v1276, %v1360
        %v1401 = vsel %vm1321, %v1278, %v1361
        %v1402 = vsel %vm1322, %v1157, %v1362
        %v1403 = vsel %vm1323, %v1159, %v1363
        %v1404 = vsel %vm1324, %v1282, %v1364
        %v1405 = vsel %vm1325, %v1284, %v1365
        %v1406 = vld [vmem:[%s6] sm:$0xff]
        %v1407 = vld [vmem:[%s6 + $0x8] sm:$0xff]
        %v1408 = vld [vmem:[%s6 + $0x10] sm:$0xff]
        %v1409 = vld [vmem:[%s6 + $0x18] sm:$0xff]
        %v1410 = vld [vmem:[%s6 + $0x20] sm:$0xff]
        %v1411 = vld [vmem:[%s7] sm:$0xff]
        %v1412 = vld [vmem:[%s7 + $0x8] sm:$0xff]
        %v1413 = vld [vmem:[%s7 + $0x10] sm:$0xff]
        %v1414 = vld [vmem:[%s7 + $0x18] sm:$0xff]
        %v1415 = vld [vmem:[%s7 + $0x20] sm:$0xff]
        %1417 = vset.pattern.permute.xlu0 0
        %1418 = vperm.xlu0 %1417, %v1411
        %v1419 = vpop.permute.xlu0 %1418
        %1422 = vset.pattern.permute.xlu0 0
        %1423 = vperm.xlu0 %1422, %v1412
        %v1424 = vpop.permute.xlu0 %1423
        %1427 = vset.pattern.permute.xlu0 0
        %1428 = vperm.xlu0 %1427, %v1413
        %v1429 = vpop.permute.xlu0 %1428
        %1432 = vset.pattern.permute.xlu0 0
        %1433 = vperm.xlu0 %1432, %v1414
        %v1434 = vpop.permute.xlu0 %1433
        %1437 = vset.pattern.permute.xlu0 0
        %1438 = vperm.xlu0 %1437, %v1415
        %v1439 = vpop.permute.xlu0 %1438
        %v1442 = vsel %vm1005, %v1406, 0
        %v1445 = vsel %vm1005, %v1407, 0
        %v1448 = vsel %vm1005, %v1408, 0
        %v1451 = vsel %vm1005, %v1409, 0
        %v1454 = vsel %vm1005, %v1410, 0
        %1456 = vmatprep.subr.mxu0 %v1367
        %1457 = vmatpush1.msra.mxu0 %v1366
        %1458 = vmatprep.subr.mxu0 %v1371
        %1459 = vmatpush1.msra.mxu0 %v1370
        %1460 = vmatprep.subr.mxu0 %v1375
        %1461 = vmatpush1.msra.mxu0 %v1374
        %1462 = vmatprep.subr.mxu0 %v1379
        %1463 = vmatpush1.msra.mxu0 %v1378
        %1464 = vmatprep.subr.mxu0 %v1383
        %1465 = vmatpush1.msra.mxu0 %v1382
        %1466 = vmatprep.subr.mxu0 %v1387
        %1467 = vmatpush1.msra.mxu0 %v1386
        %1468 = vmatprep.subr.mxu0 %v1391
        %1469 = vmatpush1.msra.mxu0 %v1390
        %1470 = vmatprep.subr.mxu0 %v1395
        %1471 = vmatpush1.msra.mxu0 %v1394
        %1472 = vmatprep.subr.mxu0 %v1399
        %1473 = vmatpush1.msra.mxu0 %v1398
        %1474 = vmatprep.subr.mxu0 %v1403
        %1475 = vmatpush1.msra.mxu0 %v1402
        %1476 = vmatprep.subr.mxu0 0.0
        %1477 = vmatpush1.msra.mxu0 0.0
        %1478 = vmatprep.subr.mxu0 0.0
        %1479 = vmatpush1.msra.mxu0 0.0
        %1480 = vmatprep.subr.mxu0 0.0
        %1481 = vmatpush1.msra.mxu0 0.0
        %1482 = vmatprep.subr.mxu0 0.0
        %1483 = vmatpush1.msra.mxu0 0.0
        %1484 = vmatprep.subr.mxu0 0.0
        %1485 = vmatpush1.msra.mxu0 0.0
        %1486 = vmatprep.subr.mxu0 0.0
        %1487 = vmatpush1.msra.mxu0 0.0
        %1488 = vmatprep.subr.mxu0 0.0
        %1489 = vmatpush1.msra.mxu0 0.0
        %1490 = vmatprep.subr.mxu0 0.0
        %1491 = vmatpush1.msra.mxu0 0.0
        %1492 = vmatprep.subr.mxu0 0.0
        %1493 = vmatpush1.msra.mxu0 0.0
        %1494 = vmatprep.subr.mxu0 0.0
        %1495 = vmatpush1.msra.mxu0 0.0
        %1496 = vmatprep.subr.mxu0 0.0
        %1497 = vmatpush1.msra.mxu0 0.0
        %1498 = vmatprep.subr.mxu0 0.0
        %1499 = vmatpush1.msra.mxu0 0.0
        %1500 = vmatprep.subr.mxu0 0.0
        %1501 = vmatpush1.msra.mxu0 0.0
        %1502 = vmatprep.subr.mxu0 0.0
        %1503 = vmatpush1.msra.mxu0 0.0
        %1504 = vmatprep.subr.mxu0 0.0
        %1505 = vmatpush1.msra.mxu0 0.0
        %1506 = vmatprep.subr.mxu0 0.0
        %1507 = vmatpush1.msra.mxu0 0.0
        %1508 = vmatprep.subr.mxu0 0.0
        %1509 = vmatpush1.msra.mxu0 0.0
        %1510 = vmatprep.subr.mxu0 0.0
        %1511 = vmatpush1.msra.mxu0 0.0
        %1512 = vmatprep.subr.mxu0 0.0
        %1513 = vmatpush1.msra.mxu0 0.0
        %1514 = vmatprep.subr.mxu0 0.0
        %1515 = vmatpush1.msra.mxu0 0.0
        %1516 = vmatprep.subr.mxu0 0.0
        %1517 = vmatpush1.msra.mxu0 0.0
        %1518 = vmatprep.subr.mxu0 0.0
        %1519 = vmatpush1.msra.mxu0 0.0
        %1520 = vmatprep.mubr.f32.mxu0 0.0
        %1521 = vmatmul.mubr.f32.gmra.mrb[0].mxu0 %v1442
        %v1522 = vpop.f32.mrb[0].mxu0
        %v1523 = vadd.f32 %v1419, %v1522
        %v1524 = vpop.f32.mrb[0].mxu0
        %v1525 = vadd.f32 %v1419, %v1524
        %1526 = vmatprep.mubr.f32.mxu0 0.0
        %1527 = vmatmul.mubr.f32.gmra.mrb[0].mxu0 %v1445
        %v1528 = vpop.f32.mrb[0].mxu0
        %v1529 = vadd.f32 %v1424, %v1528
        %v1530 = vpop.f32.mrb[0].mxu0
        %v1531 = vadd.f32 %v1424, %v1530
        %1532 = vmatprep.mubr.f32.mxu0 0.0
        %1533 = vmatmul.mubr.f32.gmra.mrb[0].mxu0 %v1448
        %v1534 = vpop.f32.mrb[0].mxu0
        %v1535 = vadd.f32 %v1429, %v1534
        %v1536 = vpop.f32.mrb[0].mxu0
        %v1537 = vadd.f32 %v1429, %v1536
        %1538 = vmatprep.mubr.f32.mxu0 0.0
        %1539 = vmatmul.mubr.f32.gmra.mrb[0].mxu0 %v1451
        %v1540 = vpop.f32.mrb[0].mxu0
        %v1541 = vadd.f32 %v1434, %v1540
        %v1542 = vpop.f32.mrb[0].mxu0
        %v1543 = vadd.f32 %v1434, %v1542
        %1544 = vmatprep.mubr.f32.mxu0 0.0
        %1545 = vmatmul.mubr.f32.gmra.mrb[0].mxu0 %v1454
        %v1546 = vpop.f32.mrb[0].mxu0
        %v1547 = vadd.f32 %v1439, %v1546
        %v1548 = vpop.f32.mrb[0].mxu0
        %v1549 = vadd.f32 %v1439, %v1548
        %1550 = vdwg.mxu0
        %1551 = vmatprep.subr.mxu0 %v1369
        %1552 = vmatpush1.msra.mxu0 %v1368
        %1553 = vmatprep.subr.mxu0 %v1373
        %1554 = vmatpush1.msra.mxu0 %v1372
        %1555 = vmatprep.subr.mxu0 %v1377
        %1556 = vmatpush1.msra.mxu0 %v1376
        %1557 = vmatprep.subr.mxu0 %v1381
        %1558 = vmatpush1.msra.mxu0 %v1380
        %1559 = vmatprep.subr.mxu0 %v1385
        %1560 = vmatpush1.msra.mxu0 %v1384
        %1561 = vmatprep.subr.mxu0 %v1389
        %1562 = vmatpush1.msra.mxu0 %v1388
        %1563 = vmatprep.subr.mxu0 %v1393
        %1564 = vmatpush1.msra.mxu0 %v1392
        %1565 = vmatprep.subr.mxu0 %v1397
        %1566 = vmatpush1.msra.mxu0 %v1396
        %1567 = vmatprep.subr.mxu0 %v1401
        %1568 = vmatpush1.msra.mxu0 %v1400
        %1569 = vmatprep.subr.mxu0 %v1405
        %1570 = vmatpush1.msra.mxu0 %v1404
        %1571 = vmatprep.subr.mxu0 0.0
        %1572 = vmatpush1.msra.mxu0 0.0
        %1573 = vmatprep.subr.mxu0 0.0
        %1574 = vmatpush1.msra.mxu0 0.0
        %1575 = vmatprep.subr.mxu0 0.0
        %1576 = vmatpush1.msra.mxu0 0.0
        %1577 = vmatprep.subr.mxu0 0.0
        %1578 = vmatpush1.msra.mxu0 0.0
        %1579 = vmatprep.subr.mxu0 0.0
        %1580 = vmatpush1.msra.mxu0 0.0
        %1581 = vmatprep.subr.mxu0 0.0
        %1582 = vmatpush1.msra.mxu0 0.0
        %1583 = vmatprep.subr.mxu0 0.0
        %1584 = vmatpush1.msra.mxu0 0.0
        %1585 = vmatprep.subr.mxu0 0.0
        %1586 = vmatpush1.msra.mxu0 0.0
        %1587 = vmatprep.subr.mxu0 0.0
        %1588 = vmatpush1.msra.mxu0 0.0
        %1589 = vmatprep.subr.mxu0 0.0
        %1590 = vmatpush1.msra.mxu0 0.0
        %1591 = vmatprep.subr.mxu0 0.0
        %1592 = vmatpush1.msra.mxu0 0.0
        %1593 = vmatprep.subr.mxu0 0.0
        %1594 = vmatpush1.msra.mxu0 0.0
        %1595 = vmatprep.subr.mxu0 0.0
        %1596 = vmatpush1.msra.mxu0 0.0
        %1597 = vmatprep.subr.mxu0 0.0
        %1598 = vmatpush1.msra.mxu0 0.0
        %1599 = vmatprep.subr.mxu0 0.0
        %1600 = vmatpush1.msra.mxu0 0.0
        %1601 = vmatprep.subr.mxu0 0.0
        %1602 = vmatpush1.msra.mxu0 0.0
        %1603 = vmatprep.subr.mxu0 0.0
        %1604 = vmatpush1.msra.mxu0 0.0
        %1605 = vmatprep.subr.mxu0 0.0
        %1606 = vmatpush1.msra.mxu0 0.0
        %1607 = vmatprep.subr.mxu0 0.0
        %1608 = vmatpush1.msra.mxu0 0.0
        %1609 = vmatprep.subr.mxu0 0.0
        %1610 = vmatpush1.msra.mxu0 0.0
        %1611 = vmatprep.subr.mxu0 0.0
        %1612 = vmatpush1.msra.mxu0 0.0
        %1613 = vmatprep.subr.mxu0 0.0
        %1614 = vmatpush1.msra.mxu0 0.0
        %1615 = vmatprep.mubr.f32.mxu0 0.0
        %1616 = vmatmul.mubr.f32.gmra.mrb[0].mxu0 %v1442
        %v1617 = vpop.f32.mrb[0].mxu0
        %v1618 = vadd.f32 %v1419, %v1617
        %v1619 = vpop.f32.mrb[0].mxu0
        %v1620 = vadd.f32 %v1419, %v1619
        %1621 = vmatprep.mubr.f32.mxu0 0.0
        %1622 = vmatmul.mubr.f32.gmra.mrb[0].mxu0 %v1445
        %v1623 = vpop.f32.mrb[0].mxu0
        %v1624 = vadd.f32 %v1424, %v1623
        %v1625 = vpop.f32.mrb[0].mxu0
        %v1626 = vadd.f32 %v1424, %v1625
        %1627 = vmatprep.mubr.f32.mxu0 0.0
        %1628 = vmatmul.mubr.f32.gmra.mrb[0].mxu0 %v1448
        %v1629 = vpop.f32.mrb[0].mxu0
        %v1630 = vadd.f32 %v1429, %v1629
        %v1631 = vpop.f32.mrb[0].mxu0
        %v1632 = vadd.f32 %v1429, %v1631
        %1633 = vmatprep.mubr.f32.mxu0 0.0
        %1634 = vmatmul.mubr.f32.gmra.mrb[0].mxu0 %v1451
        %v1635 = vpop.f32.mrb[0].mxu0
        %v1636 = vadd.f32 %v1434, %v1635
        %v1637 = vpop.f32.mrb[0].mxu0
        %v1638 = vadd.f32 %v1434, %v1637
        %1639 = vmatprep.mubr.f32.mxu0 0.0
        %1640 = vmatmul.mubr.f32.gmra.mrb[0].mxu0 %v1454
        %v1641 = vpop.f32.mrb[0].mxu0
        %v1642 = vadd.f32 %v1439, %v1641
        %v1643 = vpop.f32.mrb[0].mxu0
        %v1644 = vadd.f32 %v1439, %v1643
        %1645 = vdwg.mxu0
        %vm1646 = vcmp.gt.f32.partialorder %v1523, 0.0
        %vm1647 = vcmp.gt.f32.partialorder %v1525, 0.0
        %vm1648 = vcmp.gt.f32.partialorder %v1618, 0.0
        %vm1649 = vcmp.gt.f32.partialorder %v1620, 0.0
        %vm1650 = vcmp.gt.f32.partialorder %v1529, 0.0
        %vm1651 = vcmp.gt.f32.partialorder %v1531, 0.0
        %vm1652 = vcmp.gt.f32.partialorder %v1624, 0.0
        %vm1653 = vcmp.gt.f32.partialorder %v1626, 0.0
        %vm1654 = vcmp.gt.f32.partialorder %v1535, 0.0
        %vm1655 = vcmp.gt.f32.partialorder %v1537, 0.0
        %vm1656 = vcmp.gt.f32.partialorder %v1630, 0.0
        %vm1657 = vcmp.gt.f32.partialorder %v1632, 0.0
        %vm1658 = vcmp.gt.f32.partialorder %v1541, 0.0
        %vm1659 = vcmp.gt.f32.partialorder %v1543, 0.0
        %vm1660 = vcmp.gt.f32.partialorder %v1636, 0.0
        %vm1661 = vcmp.gt.f32.partialorder %v1638, 0.0
        %vm1662 = vcmp.gt.f32.partialorder %v1547, 0.0
        %vm1663 = vcmp.gt.f32.partialorder %v1549, 0.0
        %vm1664 = vcmp.gt.f32.partialorder %v1642, 0.0
        %vm1665 = vcmp.gt.f32.partialorder %v1644, 0.0
        %v1666 = vmul.f32 %v1523, 0.01
        %v1667 = vmul.f32 %v1525, 0.01
        %v1668 = vmul.f32 %v1618, 0.01
        %v1669 = vmul.f32 %v1620, 0.01
        %v1670 = vmul.f32 %v1529, 0.01
        %v1671 = vmul.f32 %v1531, 0.01
        %v1672 = vmul.f32 %v1624, 0.01
        %v1673 = vmul.f32 %v1626, 0.01
        %v1674 = vmul.f32 %v1535, 0.01
        %v1675 = vmul.f32 %v1537, 0.01
        %v1676 = vmul.f32 %v1630, 0.01
        %v1677 = vmul.f32 %v1632, 0.01
        %v1678 = vmul.f32 %v1541, 0.01
        %v1679 = vmul.f32 %v1543, 0.01
        %v1680 = vmul.f32 %v1636, 0.01
        %v1681 = vmul.f32 %v1638, 0.01
        %v1682 = vmul.f32 %v1547, 0.01
        %v1683 = vmul.f32 %v1549, 0.01
        %v1684 = vmul.f32 %v1642, 0.01
        %v1685 = vmul.f32 %v1644, 0.01
        %v1686 = vsel %vm1646, %v1523, %v1666
        %v1687 = vsel %vm1647, %v1525, %v1667
        %v1688 = vsel %vm1648, %v1618, %v1668
        %v1689 = vsel %vm1649, %v1620, %v1669
        %v1690 = vsel %vm1650, %v1529, %v1670
        %v1691 = vsel %vm1651, %v1531, %v1671
        %v1692 = vsel %vm1652, %v1624, %v1672
        %v1693 = vsel %vm1653, %v1626, %v1673
        %v1694 = vsel %vm1654, %v1535, %v1674
        %v1695 = vsel %vm1655, %v1537, %v1675
        %v1696 = vsel %vm1656, %v1630, %v1676
        %v1697 = vsel %vm1657, %v1632, %v1677
        %v1698 = vsel %vm1658, %v1541, %v1678
        %v1699 = vsel %vm1659, %v1543, %v1679
        %v1700 = vsel %vm1660, %v1636, %v1680
        %v1701 = vsel %vm1661, %v1638, %v1681
        %v1702 = vsel %vm1662, %v1547, %v1682
        %v1703 = vsel %vm1663, %v1549, %v1683
        %v1704 = vsel %vm1664, %v1642, %v1684
        %v1705 = vsel %vm1665, %v1644, %v1685
        %v1706 = vld [vmem:[%s8] sm:$0xff]
        %v1707 = vld [vmem:[%s8 + $0x8] sm:$0xff]
        %v1708 = vld [vmem:[%s8 + $0x10] sm:$0xf]
        %v1709 = vld [vmem:[%s9] sm:$0xff]
        %v1710 = vld [vmem:[%s9 + $0x8] sm:$0xff]
        %v1711 = vld [vmem:[%s9 + $0x10] sm:$0xf]
        %1713 = vset.pattern.permute.xlu0 0
        %1714 = vperm.xlu0 %1713, %v1709
        %v1715 = vpop.permute.xlu0 %1714
        %1718 = vset.pattern.permute.xlu0 0
        %1719 = vperm.xlu0 %1718, %v1710
        %v1720 = vpop.permute.xlu0 %1719
        %1723 = vset.pattern.permute.xlu0 0
        %1724 = vperm.xlu0 %1723, %v1711
        %v1725 = vpop.permute.xlu0 %1724
        %vm1727 = vcmask 326656
        %v1729 = vsel %vm1727, %v1706, 0
        %v1732 = vsel %vm1727, %v1707, 0
        %v1735 = vsel %vm1727, %v1708, 0
        %1737 = vmatprep.subr.mxu0 %v1687
        %1738 = vmatpush1.msra.mxu0 %v1686
        %1739 = vmatprep.subr.mxu0 %v1691
        %1740 = vmatpush1.msra.mxu0 %v1690
        %1741 = vmatprep.subr.mxu0 %v1695
        %1742 = vmatpush1.msra.mxu0 %v1694
        %1743 = vmatprep.subr.mxu0 %v1699
        %1744 = vmatpush1.msra.mxu0 %v1698
        %1745 = vmatprep.subr.mxu0 %v1703
        %1746 = vmatpush1.msra.mxu0 %v1702
        %1747 = vmatprep.subr.mxu0 0.0
        %1748 = vmatpush1.msra.mxu0 0.0
        %1749 = vmatprep.subr.mxu0 0.0
        %1750 = vmatpush1.msra.mxu0 0.0
        %1751 = vmatprep.subr.mxu0 0.0
        %1752 = vmatpush1.msra.mxu0 0.0
        %1753 = vmatprep.subr.mxu0 0.0
        %1754 = vmatpush1.msra.mxu0 0.0
        %1755 = vmatprep.subr.mxu0 0.0
        %1756 = vmatpush1.msra.mxu0 0.0
        %1757 = vmatprep.subr.mxu0 0.0
        %1758 = vmatpush1.msra.mxu0 0.0
        %1759 = vmatprep.subr.mxu0 0.0
        %1760 = vmatpush1.msra.mxu0 0.0
        %1761 = vmatprep.subr.mxu0 0.0
        %1762 = vmatpush1.msra.mxu0 0.0
        %1763 = vmatprep.subr.mxu0 0.0
        %1764 = vmatpush1.msra.mxu0 0.0
        %1765 = vmatprep.subr.mxu0 0.0
        %1766 = vmatpush1.msra.mxu0 0.0
        %1767 = vmatprep.subr.mxu0 0.0
        %1768 = vmatpush1.msra.mxu0 0.0
        %1769 = vmatprep.subr.mxu0 0.0
        %1770 = vmatpush1.msra.mxu0 0.0
        %1771 = vmatprep.subr.mxu0 0.0
        %1772 = vmatpush1.msra.mxu0 0.0
        %1773 = vmatprep.subr.mxu0 0.0
        %1774 = vmatpush1.msra.mxu0 0.0
        %1775 = vmatprep.subr.mxu0 0.0
        %1776 = vmatpush1.msra.mxu0 0.0
        %1777 = vmatprep.subr.mxu0 0.0
        %1778 = vmatpush1.msra.mxu0 0.0
        %1779 = vmatprep.subr.mxu0 0.0
        %1780 = vmatpush1.msra.mxu0 0.0
        %1781 = vmatprep.subr.mxu0 0.0
        %1782 = vmatpush1.msra.mxu0 0.0
        %1783 = vmatprep.subr.mxu0 0.0
        %1784 = vmatpush1.msra.mxu0 0.0
        %1785 = vmatprep.subr.mxu0 0.0
        %1786 = vmatpush1.msra.mxu0 0.0
        %1787 = vmatprep.subr.mxu0 0.0
        %1788 = vmatpush1.msra.mxu0 0.0
        %1789 = vmatprep.subr.mxu0 0.0
        %1790 = vmatpush1.msra.mxu0 0.0
        %1791 = vmatprep.subr.mxu0 0.0
        %1792 = vmatpush1.msra.mxu0 0.0
        %1793 = vmatprep.subr.mxu0 0.0
        %1794 = vmatpush1.msra.mxu0 0.0
        %1795 = vmatprep.subr.mxu0 0.0
        %1796 = vmatpush1.msra.mxu0 0.0
        %1797 = vmatprep.subr.mxu0 0.0
        %1798 = vmatpush1.msra.mxu0 0.0
        %1799 = vmatprep.subr.mxu0 0.0
        %1800 = vmatpush1.msra.mxu0 0.0
        %1801 = vmatprep.mubr.f32.mxu0 0.0
        %1802 = vmatmul.mubr.f32.gmra.mrb[0].mxu0 %v1729
        %v1803 = vpop.f32.mrb[0].mxu0
        %v1804 = vadd.f32 %v1715, %v1803
        %v1805 = vpop.f32.mrb[0].mxu0
        %v1806 = vadd.f32 %v1715, %v1805
        %1807 = vmatprep.mubr.f32.mxu0 0.0
        %1808 = vmatmul.mubr.f32.gmra.mrb[0].mxu0 %v1732
        %v1809 = vpop.f32.mrb[0].mxu0
        %v1810 = vadd.f32 %v1720, %v1809
        %v1811 = vpop.f32.mrb[0].mxu0
        %v1812 = vadd.f32 %v1720, %v1811
        %1813 = vmatprep.mubr.f32.mxu0 0.0
        %1814 = vmatmul.mubr.f32.gmra.mrb[0].mxu0 %v1735
        %v1815 = vpop.f32.mrb[0].mxu0
        %v1816 = vadd.f32 %v1725, %v1815
        %v1817 = vpop.f32.mrb[0].mxu0
        %v1818 = vadd.f32 %v1725, %v1817
        %1819 = vdwg.mxu0
        %1820 = vmatprep.subr.mxu0 %v1689
        %1821 = vmatpush1.msra.mxu0 %v1688
        %1822 = vmatprep.subr.mxu0 %v1693
        %1823 = vmatpush1.msra.mxu0 %v1692
        %1824 = vmatprep.subr.mxu0 %v1697
        %1825 = vmatpush1.msra.mxu0 %v1696
        %1826 = vmatprep.subr.mxu0 %v1701
        %1827 = vmatpush1.msra.mxu0 %v1700
        %1828 = vmatprep.subr.mxu0 %v1705
        %1829 = vmatpush1.msra.mxu0 %v1704
        %1830 = vmatprep.subr.mxu0 0.0
        %1831 = vmatpush1.msra.mxu0 0.0
        %1832 = vmatprep.subr.mxu0 0.0
        %1833 = vmatpush1.msra.mxu0 0.0
        %1834 = vmatprep.subr.mxu0 0.0
        %1835 = vmatpush1.msra.mxu0 0.0
        %1836 = vmatprep.subr.mxu0 0.0
        %1837 = vmatpush1.msra.mxu0 0.0
        %1838 = vmatprep.subr.mxu0 0.0
        %1839 = vmatpush1.msra.mxu0 0.0
        %1840 = vmatprep.subr.mxu0 0.0
        %1841 = vmatpush1.msra.mxu0 0.0
        %1842 = vmatprep.subr.mxu0 0.0
        %1843 = vmatpush1.msra.mxu0 0.0
        %1844 = vmatprep.subr.mxu0 0.0
        %1845 = vmatpush1.msra.mxu0 0.0
        %1846 = vmatprep.subr.mxu0 0.0
        %1847 = vmatpush1.msra.mxu0 0.0
        %1848 = vmatprep.subr.mxu0 0.0
        %1849 = vmatpush1.msra.mxu0 0.0
        %1850 = vmatprep.subr.mxu0 0.0
        %1851 = vmatpush1.msra.mxu0 0.0
        %1852 = vmatprep.subr.mxu0 0.0
        %1853 = vmatpush1.msra.mxu0 0.0
        %1854 = vmatprep.subr.mxu0 0.0
        %1855 = vmatpush1.msra.mxu0 0.0
        %1856 = vmatprep.subr.mxu0 0.0
        %1857 = vmatpush1.msra.mxu0 0.0
        %1858 = vmatprep.subr.mxu0 0.0
        %1859 = vmatpush1.msra.mxu0 0.0
        %1860 = vmatprep.subr.mxu0 0.0
        %1861 = vmatpush1.msra.mxu0 0.0
        %1862 = vmatprep.subr.mxu0 0.0
        %1863 = vmatpush1.msra.mxu0 0.0
        %1864 = vmatprep.subr.mxu0 0.0
        %1865 = vmatpush1.msra.mxu0 0.0
        %1866 = vmatprep.subr.mxu0 0.0
        %1867 = vmatpush1.msra.mxu0 0.0
        %1868 = vmatprep.subr.mxu0 0.0
        %1869 = vmatpush1.msra.mxu0 0.0
        %1870 = vmatprep.subr.mxu0 0.0
        %1871 = vmatpush1.msra.mxu0 0.0
        %1872 = vmatprep.subr.mxu0 0.0
        %1873 = vmatpush1.msra.mxu0 0.0
        %1874 = vmatprep.subr.mxu0 0.0
        %1875 = vmatpush1.msra.mxu0 0.0
        %1876 = vmatprep.subr.mxu0 0.0
        %1877 = vmatpush1.msra.mxu0 0.0
        %1878 = vmatprep.subr.mxu0 0.0
        %1879 = vmatpush1.msra.mxu0 0.0
        %1880 = vmatprep.subr.mxu0 0.0
        %1881 = vmatpush1.msra.mxu0 0.0
        %1882 = vmatprep.subr.mxu0 0.0
        %1883 = vmatpush1.msra.mxu0 0.0
        %1884 = vmatprep.mubr.f32.mxu0 0.0
        %1885 = vmatmul.mubr.f32.gmra.mrb[0].mxu0 %v1729
        %v1886 = vpop.f32.mrb[0].mxu0
        %v1887 = vadd.f32 %v1715, %v1886
        %v1888 = vpop.f32.mrb[0].mxu0
        %v1889 = vadd.f32 %v1715, %v1888
        %1890 = vmatprep.mubr.f32.mxu0 0.0
        %1891 = vmatmul.mubr.f32.gmra.mrb[0].mxu0 %v1732
        %v1892 = vpop.f32.mrb[0].mxu0
        %v1893 = vadd.f32 %v1720, %v1892
        %v1894 = vpop.f32.mrb[0].mxu0
        %v1895 = vadd.f32 %v1720, %v1894
        %1896 = vmatprep.mubr.f32.mxu0 0.0
        %1897 = vmatmul.mubr.f32.gmra.mrb[0].mxu0 %v1735
        %v1898 = vpop.f32.mrb[0].mxu0
        %v1899 = vadd.f32 %v1725, %v1898
        %v1900 = vpop.f32.mrb[0].mxu0
        %v1901 = vadd.f32 %v1725, %v1900
        %1902 = vdwg.mxu0
        %vm1903 = vcmp.gt.f32.partialorder %v1804, 0.0
        %vm1904 = vcmp.gt.f32.partialorder %v1806, 0.0
        %vm1905 = vcmp.gt.f32.partialorder %v1887, 0.0
        %vm1906 = vcmp.gt.f32.partialorder %v1889, 0.0
        %vm1907 = vcmp.gt.f32.partialorder %v1810, 0.0
        %vm1908 = vcmp.gt.f32.partialorder %v1812, 0.0
        %vm1909 = vcmp.gt.f32.partialorder %v1893, 0.0
        %vm1910 = vcmp.gt.f32.partialorder %v1895, 0.0
        %vm1911 = vcmp.gt.f32.partialorder %v1816, 0.0
        %vm1912 = vcmp.gt.f32.partialorder %v1818, 0.0
        %vm1913 = vcmp.gt.f32.partialorder %v1899, 0.0
        %vm1914 = vcmp.gt.f32.partialorder %v1901, 0.0
        %v1915 = vmul.f32 %v1804, 0.01
        %v1916 = vmul.f32 %v1806, 0.01
        %v1917 = vmul.f32 %v1887, 0.01
        %v1918 = vmul.f32 %v1889, 0.01
        %v1919 = vmul.f32 %v1810, 0.01
        %v1920 = vmul.f32 %v1812, 0.01
        %v1921 = vmul.f32 %v1893, 0.01
        %v1922 = vmul.f32 %v1895, 0.01
        %v1923 = vmul.f32 %v1816, 0.01
        %v1924 = vmul.f32 %v1818, 0.01
        %v1925 = vmul.f32 %v1899, 0.01
        %v1926 = vmul.f32 %v1901, 0.01
        %v1927 = vsel %vm1903, %v1804, %v1915
        %v1928 = vsel %vm1904, %v1806, %v1916
        %v1929 = vsel %vm1905, %v1887, %v1917
        %v1930 = vsel %vm1906, %v1889, %v1918
        %v1931 = vsel %vm1907, %v1810, %v1919
        %v1932 = vsel %vm1908, %v1812, %v1920
        %v1933 = vsel %vm1909, %v1893, %v1921
        %v1934 = vsel %vm1910, %v1895, %v1922
        %v1935 = vsel %vm1911, %v1816, %v1923
        %v1936 = vsel %vm1912, %v1818, %v1924
        %v1937 = vsel %vm1913, %v1899, %v1925
        %v1938 = vsel %vm1914, %v1901, %v1926
        %v1939 = vsub.f32 %v1927, %v1929
        %v1940 = vsub.f32 %v1928, %v1930
        %v1941 = vsub.f32 %v1931, %v1933
        %v1942 = vsub.f32 %v1932, %v1934
        %v1943 = vsub.f32 %v1935, %v1937
        %v1944 = vsub.f32 %v1936, %v1938
        %v1945 = vld [vmem:[%s10] sm:$0x1]
        %vm1946 = vcmask 162816
        %v1948 = vsel %vm1946, %v1945, 0
        %vm1950 = vcmask 1043456
        %v1952 = vsel %vm1950, %v1943, 0
        %v1955 = vsel %vm1950, %v1944, 0
        %1957 = vmatprep.subr.mxu0 %v1940
        %1958 = vmatpush1.msra.mxu0 %v1939
        %1959 = vmatprep.subr.mxu0 %v1942
        %1960 = vmatpush1.msra.mxu0 %v1941
        %1961 = vmatprep.subr.mxu0 %v1955
        %1962 = vmatpush1.msra.mxu0 %v1952
        %1963 = vmatprep.subr.mxu0 0.0
        %1964 = vmatpush1.msra.mxu0 0.0
        %1965 = vmatprep.subr.mxu0 0.0
        %1966 = vmatpush1.msra.mxu0 0.0
        %1967 = vmatprep.subr.mxu0 0.0
        %1968 = vmatpush1.msra.mxu0 0.0
        %1969 = vmatprep.subr.mxu0 0.0
        %1970 = vmatpush1.msra.mxu0 0.0
        %1971 = vmatprep.subr.mxu0 0.0
        %1972 = vmatpush1.msra.mxu0 0.0
        %1973 = vmatprep.subr.mxu0 0.0
        %1974 = vmatpush1.msra.mxu0 0.0
        %1975 = vmatprep.subr.mxu0 0.0
        %1976 = vmatpush1.msra.mxu0 0.0
        %1977 = vmatprep.subr.mxu0 0.0
        %1978 = vmatpush1.msra.mxu0 0.0
        %1979 = vmatprep.subr.mxu0 0.0
        %1980 = vmatpush1.msra.mxu0 0.0
        %1981 = vmatprep.subr.mxu0 0.0
        %1982 = vmatpush1.msra.mxu0 0.0
        %1983 = vmatprep.subr.mxu0 0.0
        %1984 = vmatpush1.msra.mxu0 0.0
        %1985 = vmatprep.subr.mxu0 0.0
        %1986 = vmatpush1.msra.mxu0 0.0
        %1987 = vmatprep.subr.mxu0 0.0
        %1988 = vmatpush1.msra.mxu0 0.0
        %1989 = vmatprep.subr.mxu0 0.0
        %1990 = vmatpush1.msra.mxu0 0.0
        %1991 = vmatprep.subr.mxu0 0.0
        %1992 = vmatpush1.msra.mxu0 0.0
        %1993 = vmatprep.subr.mxu0 0.0
        %1994 = vmatpush1.msra.mxu0 0.0
        %1995 = vmatprep.subr.mxu0 0.0
        %1996 = vmatpush1.msra.mxu0 0.0
        %1997 = vmatprep.subr.mxu0 0.0
        %1998 = vmatpush1.msra.mxu0 0.0
        %1999 = vmatprep.subr.mxu0 0.0
        %2000 = vmatpush1.msra.mxu0 0.0
        %2001 = vmatprep.subr.mxu0 0.0
        %2002 = vmatpush1.msra.mxu0 0.0
        %2003 = vmatprep.subr.mxu0 0.0
        %2004 = vmatpush1.msra.mxu0 0.0
        %2005 = vmatprep.subr.mxu0 0.0
        %2006 = vmatpush1.msra.mxu0 0.0
        %2007 = vmatprep.subr.mxu0 0.0
        %2008 = vmatpush1.msra.mxu0 0.0
        %2009 = vmatprep.subr.mxu0 0.0
        %2010 = vmatpush1.msra.mxu0 0.0
        %2011 = vmatprep.subr.mxu0 0.0
        %2012 = vmatpush1.msra.mxu0 0.0
        %2013 = vmatprep.subr.mxu0 0.0
        %2014 = vmatpush1.msra.mxu0 0.0
        %2015 = vmatprep.subr.mxu0 0.0
        %2016 = vmatpush1.msra.mxu0 0.0
        %2017 = vmatprep.subr.mxu0 0.0
        %2018 = vmatpush1.msra.mxu0 0.0
        %2019 = vmatprep.subr.mxu0 0.0
        %2020 = vmatpush1.msra.mxu0 0.0
        %2021 = vmatprep.mubr.f32.mxu0 0.0
        %2022 = vmatmul.mubr.f32.gmra.mrb[0].mxu0 %v1948
        %v2023 = vpop.f32.mrb[0].mxu0
        %v2024 = vadd.f32 0.0, %v2023
        %v2025 = vpop.f32.mrb[0].mxu0
        %v2026 = vadd.f32 0.0, %v2025
        %2027 = vdwg.mxu0
        %v2030 = vcombine.low %v2024, %v2026
        %v2032 = vunpack.c.l.s4 1966171168
        %v2033 = vunpack.c.0.s8 %v2032
        %v2034 = vlaneseq
        %v2035 = vshrl.u32 %v2034, 7
        %v2036 = vsub.s32 %v2033, %v2035
        %v2037 = vrot.slane %v2030, %v2036
        %v2039 = vunpack.c.l.s4 1966171168
        %v2040 = vunpack.c.0.s8 %v2039
        %v2041 = vlaneseq
        %v2042 = vshrl.u32 %v2041, 7
        %v2043 = vsub.s32 %v2040, %v2042
        %v2044 = vrot.slane %v2037, %v2043
        %v2046 = vlaneseq
        %vm2047 = vcmp.ge.s32.totalorder %v2046, 0
        %vm2048 = vcmp.lt.s32.totalorder %v2046, 256
        %vm2049 = vmand %vm2047, %vm2048
        %2050 = vst.msk [vmem:[%s410] sm:$0x3] %vm2049, %v2044
        %s2051 = sand.u32 %s269, 1
        %s2052 = scalar_lea.sflag [#allocation4], %s2051
        %s2053 = sand.u32 %s269, 1
        %s2054 = smul.addr %s2053, 2
        %s2055 = scalar_lea.vmem [#allocation3], %s2054
        // Predicated region
        $region88: #{tpu_custom_call.1} parent=82 // pred_check
          %p2056 = pneg %p279
        $region89: #{tpu_custom_call.1} parent=82 // pred_check_branch
          %2058 = sbr.rel (%p2056) target = $region91
        $region90: #{tpu_custom_call.1} parent=82 // pred_region
          %s2059 = smul.u32 2, %s25
          %s2061 = ssub.s32 32, 32
          %2062 = vsyncadd %s2052, %s2061
          %s2063 = smul.addr %s2059, 16
          %s2064 = scalar_lea.hbm %s11, %s2063
          %s2066 = sshll.u32 %s2055, 4
          %s2067 = int_to_ptr.vmem [resolvable:$true] %s2066
          %2069 = dma.vmem_to_hbm [thread:$0]  %s2067, 32, %s2064, %s2052
        $region91: #{tpu_custom_call.1} parent=82 // pred_fallthru
          _
      $region83: #{tpu_custom_call.1} parent=5 // pred_fallthru
        _
      %p2070 = scmp.le.s32.totalorder 2, %s20
      // Predicated region
      $region92: #{tpu_custom_call.1} parent=5 // pred_check
        %p2071 = pneg %p2070
      $region93: #{tpu_custom_call.1} parent=5 // pred_check_branch
        %2073 = sbr.rel (%p2071) target = $region95
      $region94: #{tpu_custom_call.1} parent=5 // pred_region
        %s2074 = ssub.s32 %s20, 2
        // Predicated region
        $region96: #{tpu_custom_call.1} parent=94 // pred_check
          %p2075 = pneg %p285
        $region97: #{tpu_custom_call.1} parent=94 // pred_check_branch
          %2077 = sbr.rel (%p2075) target = $region99
        $region98: #{tpu_custom_call.1} parent=94 // pred_region
          %s2078 = sand.u32 %s270, 1
          %s2079 = scalar_lea.sflag [#allocation4], %s2078
          %s2080 = sand.u32 %s270, 1
          %s2081 = smul.addr %s2080, 2
          %s2082 = scalar_lea.vmem [#allocation3], %s2081
          %2083 = dma.done %s2079, 32
        $region99: #{tpu_custom_call.1} parent=94 // pred_fallthru
          _
      $region95: #{tpu_custom_call.1} parent=5 // pred_fallthru
        _
    $region6: #{tpu_custom_call.1} parent=1 // loop_footer
      %s24 = sadd.s32 1, %s20
    $region7: #{tpu_custom_call.1} parent=1 // loop_footer_branch
      %19 = sbr.rel target = $region3
    $region8: #{tpu_custom_call.1} parent=1 // loop_exit
      _
    %2084 = vsyncpa [#allocation4], 1
    %s2085 = scalar_lea.sflag [#allocation4], 1
    %2086 = vsyncpa %s2085, 1

</llo_original>
